<compile_context>
chip_gen: v5e
topology: v5e:2x2
jax: 0.10.0
libtpu: 0.0.40
codegen_flags: <defaults>
</compile_context>

<pallas_src>
import functools

import jax
import jax.numpy as jnp
from jax.experimental import pallas as pl
from jax.experimental.pallas import tpu as pltpu


# ---------------------------------------------------------------------------
# Fused permute + LSTM + classifier kernel (single pallas_call, all in VMEM)
# ---------------------------------------------------------------------------
def _lstm_kernel(t_steps, batch, hidden,
                 x_ref, wih_ref, whh_ref, b_ref, wfc_ref, bfc_ref, o_ref):
    """x_ref   : (B, F, T)   raw input, exactly as SingleLSTMModel.forward gets it
       wih_ref : (4H, F)     LSTM weight_ih_l0 (PyTorch-native layout; gates i,f,g,o)
       whh_ref : (H, 4H)     LSTM weight_hh_l0, pre-transposed at init
       b_ref   : (1, 4H)     b_ih + b_hh, combined at init
       wfc_ref : (H, C)      classifier weight, pre-transposed at init
       bfc_ref : (1, C)      classifier bias
       o_ref   : (B, C)      logits from the last timestep's hidden state
    """
    f32 = jnp.float32

    # 1) In-kernel permute + input projection (replaces x.permute(0, 2, 1)).
    #    Per batch row: (4H, F) @ (F, T) -> (4H, T) on the MXU, then a 2-D
    #    (4H, T) -> (T, 4H) transpose, so the gate axis (4H = 128) is lane-dense.
    wih = wih_ref[...]                                            # (4H, F)
    proj = []
    for b in range(batch):
        pT = jnp.dot(wih, x_ref[b], preferred_element_type=f32)  # (4H, T)
        proj.append(pT.T)                                         # (T, 4H)
    # Batch-major gate pre-activations for every timestep: row index = b*T + t.
    xg = jnp.concatenate(proj, axis=0) + b_ref[...]               # (B*T, 4H)

    # 2) Serial recurrence, fully unrolled (T small & static); (h, c) live in
    #    vregs, whh is loaded once (review #3).
    # TODO(synk): if the bundle dump shows the RHS re-pushed each step, switch
    #             to pltpu.matmul_push_rhs / matmul_acc_lhs to keep whh
    #             stationary in the MXU across the 16 timesteps (review #6).
    whh = whh_ref[...]                                            # (H, 4H)
    h = jnp.zeros((batch, hidden), f32)
    c = jnp.zeros((batch, hidden), f32)

    for t in range(t_steps):
        # Per-step x contribution: depends only on xg (not on h/c), so this
        # assembly sits off the serial recurrence chain and overlaps with the
        # MXU/EUP work of neighbouring steps.
        gx = jnp.concatenate(
            [xg[b * t_steps + t:b * t_steps + t + 1, :] for b in range(batch)],
            axis=0)                                               # (B, 4H)
        gates = gx + jnp.dot(h, whh, preferred_element_type=f32)  # (B, 4H)

        # Full-width transcendentals: 2 EUP pushes per step instead of 5 (review #5).
        sig = jax.nn.sigmoid(gates)
        th = jnp.tanh(gates)
        i = sig[:, 0 * hidden:1 * hidden]
        f = sig[:, 1 * hidden:2 * hidden]
        g = th[:, 2 * hidden:3 * hidden]
        o = sig[:, 3 * hidden:4 * hidden]

        c = f * c + i * g
        h = o * jnp.tanh(c)

    # 3) Fused classifier head on the final hidden state.
    logits = jnp.dot(h, wfc_ref[...], preferred_element_type=f32) + bfc_ref[...]
    o_ref[...] = logits.astype(o_ref.dtype)


# ---------------------------------------------------------------------------
# Wrapper (== SingleLSTMModel.forward): exactly one pallas_call, no XLA glue.
# ---------------------------------------------------------------------------
def single_lstm_forward(x, params):
    """x: (B, n_features, T) raw features -> logits (B, n_classes)."""
    b, _, t = x.shape
    hidden = params["whh"].shape[0]
    n_cls = params["wfc"].shape[1]

    vmem = pl.BlockSpec(memory_space=pltpu.MemorySpace.VMEM)
    return pl.pallas_call(
        functools.partial(_lstm_kernel, t, b, hidden),
        out_shape=jax.ShapeDtypeStruct((b, n_cls), x.dtype),
        in_specs=[vmem] * 6,
        out_specs=vmem,
    )(x, params["wih"], params["whh"], params["bias"],
      params["wfc"], params["bfc"])


# ---------------------------------------------------------------------------
# Parameters: PyTorch LSTM/Linear init, stored in kernel-ready layout ONCE here
# (combined bias, pre-transposed weights) so the forward pass has zero per-call
# preprocessing ops (review #2).
# ---------------------------------------------------------------------------
def init_params(key, n_features=40, hidden=32, n_classes=8):
    ks = jax.random.split(key, 6)
    bound = 1.0 / (hidden ** 0.5)

    def u(k, shape):
        return jax.random.uniform(k, shape, jnp.float32, -bound, bound)

    w_ih = u(ks[0], (4 * hidden, n_features))   # nn.LSTM weight_ih_l0 (4H, F)
    w_hh = u(ks[1], (4 * hidden, hidden))       # nn.LSTM weight_hh_l0 (4H, H)
    b_ih = u(ks[2], (4 * hidden,))
    b_hh = u(ks[3], (4 * hidden,))
    w_fc = u(ks[4], (n_classes, hidden))        # nn.Linear weight (C, H)
    b_fc = u(ks[5], (n_classes,))

    return {
        "wih": w_ih,                                    # (4H, F)  native layout
        "whh": jnp.transpose(w_hh),                     # (H, 4H)
        "bias": (b_ih + b_hh).reshape(1, 4 * hidden),   # (1, 4H)
        "wfc": jnp.transpose(w_fc),                     # (H, C)
        "bfc": b_fc.reshape(1, n_classes),              # (1, C)
    }


# ---------------------------------------------------------------------------
# Pure-JAX reference (same math) for a numerical sanity check.
# ---------------------------------------------------------------------------
def _ref_forward(x, params):
    b, _, t_steps = x.shape
    hidden = params["whh"].shape[0]
    xs = jnp.transpose(x, (0, 2, 1))                     # (B, T, F)
    h = jnp.zeros((b, hidden), jnp.float32)
    c = jnp.zeros((b, hidden), jnp.float32)
    for t in range(t_steps):
        gates = xs[:, t, :] @ params["wih"].T + h @ params["whh"] + params["bias"]
        i = jax.nn.sigmoid(gates[:, 0 * hidden:1 * hidden])
        f = jax.nn.sigmoid(gates[:, 1 * hidden:2 * hidden])
        g = jnp.tanh(gates[:, 2 * hidden:3 * hidden])
        o = jax.nn.sigmoid(gates[:, 3 * hidden:4 * hidden])
        c = f * c + i * g
        h = o * jnp.tanh(c)
    return h @ params["wfc"] + params["bfc"]


if __name__ == "__main__":
    key = jax.random.PRNGKey(0)
    k_param, k_x = jax.random.split(key)

    B, F, T, H, NCLS = 2, 40, 16, 32, 8          # H=32 -> 4H=128 (lane-dense gates)
    params = init_params(k_param, n_features=F, hidden=H, n_classes=NCLS)
    x = jax.random.normal(k_x, (B, F, T), jnp.float32)   # (B, n_features, T)

    out = jax.jit(single_lstm_forward)(x, params)
    out = jax.block_until_ready(out)

    assert out.shape == (B, NCLS), out.shape
    assert jnp.isfinite(out).all()
    ref = _ref_forward(x, params)
    assert jnp.allclose(out, ref, atol=1e-2, rtol=1e-2), (out, ref)
    print("KERNEL_OK")
</pallas_src>

<mosaic_0001>
module attributes {stable_mosaic.version = 11 : i64} {
  func.func @_lstm_kernel(%arg0: memref<2x40x16xf32, #tpu.memory_space<vmem>>, %arg1: memref<128x40xf32, #tpu.memory_space<vmem>>, %arg2: memref<32x128xf32, #tpu.memory_space<vmem>>, %arg3: memref<1x128xf32, #tpu.memory_space<vmem>>, %arg4: memref<32x8xf32, #tpu.memory_space<vmem>>, %arg5: memref<1x8xf32, #tpu.memory_space<vmem>>, %arg6: memref<2x8xf32, #tpu.memory_space<vmem>>) attributes {dimension_semantics = [], scalar_prefetch = 0 : i64, scratch_operands = 0 : i64, tpu.core_type = #tpu.core_type<tc>} {
    %c0 = arith.constant 0 : index
    %c0_0 = arith.constant 0 : index
    %0 = vector.load %arg1[%c0, %c0_0] : memref<128x40xf32, #tpu.memory_space<vmem>>, vector<128x40xf32>
    %c0_1 = arith.constant 0 : index
    %c0_2 = arith.constant 0 : index
    %c0_3 = arith.constant 0 : index
    %1 = vector.load %arg0[%c0_1, %c0_2, %c0_3] : memref<2x40x16xf32, #tpu.memory_space<vmem>>, vector<1x40x16xf32>
    %2 = vector.shape_cast %1 : vector<1x40x16xf32> to vector<40x16xf32>
    %cst = arith.constant dense<0.000000e+00> : vector<128x16xf32>
    %3 = tpu.matmul %0, %2, %cst {dimension_numbers = #tpu.dot_dimension_numbers<[1], [0], [0], [1], [0, 0, 1, 1], [], []>} : vector<128x40xf32>, vector<40x16xf32>, vector<128x16xf32> -> vector<128x16xf32>
    %4 = tpu.transpose %3, [1, 0] : vector<128x16xf32> -> vector<16x128xf32>
    %c1 = arith.constant 1 : index
    %c0_4 = arith.constant 0 : index
    %c0_5 = arith.constant 0 : index
    %5 = vector.load %arg0[%c1, %c0_4, %c0_5] : memref<2x40x16xf32, #tpu.memory_space<vmem>>, vector<1x40x16xf32>
    %6 = vector.shape_cast %5 : vector<1x40x16xf32> to vector<40x16xf32>
    %cst_6 = arith.constant dense<0.000000e+00> : vector<128x16xf32>
    %7 = tpu.matmul %0, %6, %cst_6 {dimension_numbers = #tpu.dot_dimension_numbers<[1], [0], [0], [1], [0, 0, 1, 1], [], []>} : vector<128x40xf32>, vector<40x16xf32>, vector<128x16xf32> -> vector<128x16xf32>
    %8 = tpu.transpose %7, [1, 0] : vector<128x16xf32> -> vector<16x128xf32>
    %9 = tpu.concatenate %4, %8 in 0 : vector<16x128xf32>, vector<16x128xf32> -> vector<32x128xf32>
    %c0_7 = arith.constant 0 : index
    %c0_8 = arith.constant 0 : index
    %10 = vector.load %arg3[%c0_7, %c0_8] : memref<1x128xf32, #tpu.memory_space<vmem>>, vector<1x128xf32>
    %11 = vector.broadcast %10 : vector<1x128xf32> to vector<32x128xf32>
    %12 = arith.addf %9, %11 : vector<32x128xf32>
    %c0_9 = arith.constant 0 : index
    %c0_10 = arith.constant 0 : index
    %13 = vector.load %arg2[%c0_9, %c0_10] : memref<32x128xf32, #tpu.memory_space<vmem>>, vector<32x128xf32>
    %cst_11 = arith.constant 0.000000e+00 : f32
    %14 = vector.broadcast %cst_11 : f32 to vector<2x32xf32>
    %cst_12 = arith.constant 0.000000e+00 : f32
    %15 = vector.broadcast %cst_12 : f32 to vector<2x32xf32>
    %16 = vector.extract_strided_slice %12 {offsets = [0, 0], sizes = [1, 128], strides = [1, 1]} : vector<32x128xf32> to vector<1x128xf32>
    %17 = vector.extract_strided_slice %12 {offsets = [16, 0], sizes = [1, 128], strides = [1, 1]} : vector<32x128xf32> to vector<1x128xf32>
    %18 = tpu.concatenate %16, %17 in 0 : vector<1x128xf32>, vector<1x128xf32> -> vector<2x128xf32>
    %cst_13 = arith.constant dense<0.000000e+00> : vector<2x128xf32>
    %19 = tpu.matmul %14, %13, %cst_13 {dimension_numbers = #tpu.dot_dimension_numbers<[1], [0], [0], [1], [0, 0, 1, 1], [], []>} : vector<2x32xf32>, vector<32x128xf32>, vector<2x128xf32> -> vector<2x128xf32>
    %20 = arith.addf %18, %19 : vector<2x128xf32>
    %21 = arith.negf %20 : vector<2x128xf32>
    %22 = math.exp %21 : vector<2x128xf32>
    %cst_14 = arith.constant 1.000000e+00 : f32
    %23 = vector.broadcast %cst_14 : f32 to vector<2x128xf32>
    %24 = arith.addf %23, %22 : vector<2x128xf32>
    %25 = arith.divf %23, %24 : vector<2x128xf32>
    %26 = math.tanh %20 : vector<2x128xf32>
    %27 = vector.extract_strided_slice %25 {offsets = [0, 0], sizes = [2, 32], strides = [1, 1]} : vector<2x128xf32> to vector<2x32xf32>
    %28 = vector.extract_strided_slice %25 {offsets = [0, 32], sizes = [2, 32], strides = [1, 1]} : vector<2x128xf32> to vector<2x32xf32>
    %29 = vector.extract_strided_slice %26 {offsets = [0, 64], sizes = [2, 32], strides = [1, 1]} : vector<2x128xf32> to vector<2x32xf32>
    %30 = vector.extract_strided_slice %25 {offsets = [0, 96], sizes = [2, 32], strides = [1, 1]} : vector<2x128xf32> to vector<2x32xf32>
    %31 = arith.mulf %28, %15 : vector<2x32xf32>
    %32 = arith.mulf %27, %29 : vector<2x32xf32>
    %33 = arith.addf %31, %32 : vector<2x32xf32>
    %34 = math.tanh %33 : vector<2x32xf32>
    %35 = arith.mulf %30, %34 : vector<2x32xf32>
    %36 = vector.extract_strided_slice %12 {offsets = [1, 0], sizes = [1, 128], strides = [1, 1]} : vector<32x128xf32> to vector<1x128xf32>
    %37 = vector.extract_strided_slice %12 {offsets = [17, 0], sizes = [1, 128], strides = [1, 1]} : vector<32x128xf32> to vector<1x128xf32>
    %38 = tpu.concatenate %36, %37 in 0 : vector<1x128xf32>, vector<1x128xf32> -> vector<2x128xf32>
    %cst_15 = arith.constant dense<0.000000e+00> : vector<2x128xf32>
    %39 = tpu.matmul %35, %13, %cst_15 {dimension_numbers = #tpu.dot_dimension_numbers<[1], [0], [0], [1], [0, 0, 1, 1], [], []>} : vector<2x32xf32>, vector<32x128xf32>, vector<2x128xf32> -> vector<2x128xf32>
    %40 = arith.addf %38, %39 : vector<2x128xf32>
    %41 = arith.negf %40 : vector<2x128xf32>
    %42 = math.exp %41 : vector<2x128xf32>
    %cst_16 = arith.constant 1.000000e+00 : f32
    %43 = vector.broadcast %cst_16 : f32 to vector<2x128xf32>
    %44 = arith.addf %43, %42 : vector<2x128xf32>
    %45 = arith.divf %43, %44 : vector<2x128xf32>
    %46 = math.tanh %40 : vector<2x128xf32>
    %47 = vector.extract_strided_slice %45 {offsets = [0, 0], sizes = [2, 32], strides = [1, 1]} : vector<2x128xf32> to vector<2x32xf32>
    %48 = vector.extract_strided_slice %45 {offsets = [0, 32], sizes = [2, 32], strides = [1, 1]} : vector<2x128xf32> to vector<2x32xf32>
    %49 = vector.extract_strided_slice %46 {offsets = [0, 64], sizes = [2, 32], strides = [1, 1]} : vector<2x128xf32> to vector<2x32xf32>
    %50 = vector.extract_strided_slice %45 {offsets = [0, 96], sizes = [2, 32], strides = [1, 1]} : vector<2x128xf32> to vector<2x32xf32>
    %51 = arith.mulf %48, %33 : vector<2x32xf32>
    %52 = arith.mulf %47, %49 : vector<2x32xf32>
    %53 = arith.addf %51, %52 : vector<2x32xf32>
    %54 = math.tanh %53 : vector<2x32xf32>
    %55 = arith.mulf %50, %54 : vector<2x32xf32>
    %56 = vector.extract_strided_slice %12 {offsets = [2, 0], sizes = [1, 128], strides = [1, 1]} : vector<32x128xf32> to vector<1x128xf32>
    %57 = vector.extract_strided_slice %12 {offsets = [18, 0], sizes = [1, 128], strides = [1, 1]} : vector<32x128xf32> to vector<1x128xf32>
    %58 = tpu.concatenate %56, %57 in 0 : vector<1x128xf32>, vector<1x128xf32> -> vector<2x128xf32>
    %cst_17 = arith.constant dense<0.000000e+00> : vector<2x128xf32>
    %59 = tpu.matmul %55, %13, %cst_17 {dimension_numbers = #tpu.dot_dimension_numbers<[1], [0], [0], [1], [0, 0, 1, 1], [], []>} : vector<2x32xf32>, vector<32x128xf32>, vector<2x128xf32> -> vector<2x128xf32>
    %60 = arith.addf %58, %59 : vector<2x128xf32>
    %61 = arith.negf %60 : vector<2x128xf32>
    %62 = math.exp %61 : vector<2x128xf32>
    %cst_18 = arith.constant 1.000000e+00 : f32
    %63 = vector.broadcast %cst_18 : f32 to vector<2x128xf32>
    %64 = arith.addf %63, %62 : vector<2x128xf32>
    %65 = arith.divf %63, %64 : vector<2x128xf32>
    %66 = math.tanh %60 : vector<2x128xf32>
    %67 = vector.extract_strided_slice %65 {offsets = [0, 0], sizes = [2, 32], strides = [1, 1]} : vector<2x128xf32> to vector<2x32xf32>
    %68 = vector.extract_strided_slice %65 {offsets = [0, 32], sizes = [2, 32], strides = [1, 1]} : vector<2x128xf32> to vector<2x32xf32>
    %69 = vector.extract_strided_slice %66 {offsets = [0, 64], sizes = [2, 32], strides = [1, 1]} : vector<2x128xf32> to vector<2x32xf32>
    %70 = vector.extract_strided_slice %65 {offsets = [0, 96], sizes = [2, 32], strides = [1, 1]} : vector<2x128xf32> to vector<2x32xf32>
    %71 = arith.mulf %68, %53 : vector<2x32xf32>
    %72 = arith.mulf %67, %69 : vector<2x32xf32>
    %73 = arith.addf %71, %72 : vector<2x32xf32>
    %74 = math.tanh %73 : vector<2x32xf32>
    %75 = arith.mulf %70, %74 : vector<2x32xf32>
    %76 = vector.extract_strided_slice %12 {offsets = [3, 0], sizes = [1, 128], strides = [1, 1]} : vector<32x128xf32> to vector<1x128xf32>
    %77 = vector.extract_strided_slice %12 {offsets = [19, 0], sizes = [1, 128], strides = [1, 1]} : vector<32x128xf32> to vector<1x128xf32>
    %78 = tpu.concatenate %76, %77 in 0 : vector<1x128xf32>, vector<1x128xf32> -> vector<2x128xf32>
    %cst_19 = arith.constant dense<0.000000e+00> : vector<2x128xf32>
    %79 = tpu.matmul %75, %13, %cst_19 {dimension_numbers = #tpu.dot_dimension_numbers<[1], [0], [0], [1], [0, 0, 1, 1], [], []>} : vector<2x32xf32>, vector<32x128xf32>, vector<2x128xf32> -> vector<2x128xf32>
    %80 = arith.addf %78, %79 : vector<2x128xf32>
    %81 = arith.negf %80 : vector<2x128xf32>
    %82 = math.exp %81 : vector<2x128xf32>
    %cst_20 = arith.constant 1.000000e+00 : f32
    %83 = vector.broadcast %cst_20 : f32 to vector<2x128xf32>
    %84 = arith.addf %83, %82 : vector<2x128xf32>
    %85 = arith.divf %83, %84 : vector<2x128xf32>
    %86 = math.tanh %80 : vector<2x128xf32>
    %87 = vector.extract_strided_slice %85 {offsets = [0, 0], sizes = [2, 32], strides = [1, 1]} : vector<2x128xf32> to vector<2x32xf32>
    %88 = vector.extract_strided_slice %85 {offsets = [0, 32], sizes = [2, 32], strides = [1, 1]} : vector<2x128xf32> to vector<2x32xf32>
    %89 = vector.extract_strided_slice %86 {offsets = [0, 64], sizes = [2, 32], strides = [1, 1]} : vector<2x128xf32> to vector<2x32xf32>
    %90 = vector.extract_strided_slice %85 {offsets = [0, 96], sizes = [2, 32], strides = [1, 1]} : vector<2x128xf32> to vector<2x32xf32>
    %91 = arith.mulf %88, %73 : vector<2x32xf32>
    %92 = arith.mulf %87, %89 : vector<2x32xf32>
    %93 = arith.addf %91, %92 : vector<2x32xf32>
    %94 = math.tanh %93 : vector<2x32xf32>
    %95 = arith.mulf %90, %94 : vector<2x32xf32>
    %96 = vector.extract_strided_slice %12 {offsets = [4, 0], sizes = [1, 128], strides = [1, 1]} : vector<32x128xf32> to vector<1x128xf32>
    %97 = vector.extract_strided_slice %12 {offsets = [20, 0], sizes = [1, 128], strides = [1, 1]} : vector<32x128xf32> to vector<1x128xf32>
    %98 = tpu.concatenate %96, %97 in 0 : vector<1x128xf32>, vector<1x128xf32> -> vector<2x128xf32>
    %cst_21 = arith.constant dense<0.000000e+00> : vector<2x128xf32>
    %99 = tpu.matmul %95, %13, %cst_21 {dimension_numbers = #tpu.dot_dimension_numbers<[1], [0], [0], [1], [0, 0, 1, 1], [], []>} : vector<2x32xf32>, vector<32x128xf32>, vector<2x128xf32> -> vector<2x128xf32>
    %100 = arith.addf %98, %99 : vector<2x128xf32>
    %101 = arith.negf %100 : vector<2x128xf32>
    %102 = math.exp %101 : vector<2x128xf32>
    %cst_22 = arith.constant 1.000000e+00 : f32
    %103 = vector.broadcast %cst_22 : f32 to vector<2x128xf32>
    %104 = arith.addf %103, %102 : vector<2x128xf32>
    %105 = arith.divf %103, %104 : vector<2x128xf32>
    %106 = math.tanh %100 : vector<2x128xf32>
    %107 = vector.extract_strided_slice %105 {offsets = [0, 0], sizes = [2, 32], strides = [1, 1]} : vector<2x128xf32> to vector<2x32xf32>
    %108 = vector.extract_strided_slice %105 {offsets = [0, 32], sizes = [2, 32], strides = [1, 1]} : vector<2x128xf32> to vector<2x32xf32>
    %109 = vector.extract_strided_slice %106 {offsets = [0, 64], sizes = [2, 32], strides = [1, 1]} : vector<2x128xf32> to vector<2x32xf32>
    %110 = vector.extract_strided_slice %105 {offsets = [0, 96], sizes = [2, 32], strides = [1, 1]} : vector<2x128xf32> to vector<2x32xf32>
    %111 = arith.mulf %108, %93 : vector<2x32xf32>
    %112 = arith.mulf %107, %109 : vector<2x32xf32>
    %113 = arith.addf %111, %112 : vector<2x32xf32>
    %114 = math.tanh %113 : vector<2x32xf32>
    %115 = arith.mulf %110, %114 : vector<2x32xf32>
    %116 = vector.extract_strided_slice %12 {offsets = [5, 0], sizes = [1, 128], strides = [1, 1]} : vector<32x128xf32> to vector<1x128xf32>
    %117 = vector.extract_strided_slice %12 {offsets = [21, 0], sizes = [1, 128], strides = [1, 1]} : vector<32x128xf32> to vector<1x128xf32>
    %118 = tpu.concatenate %116, %117 in 0 : vector<1x128xf32>, vector<1x128xf32> -> vector<2x128xf32>
    %cst_23 = arith.constant dense<0.000000e+00> : vector<2x128xf32>
    %119 = tpu.matmul %115, %13, %cst_23 {dimension_numbers = #tpu.dot_dimension_numbers<[1], [0], [0], [1], [0, 0, 1, 1], [], []>} : vector<2x32xf32>, vector<32x128xf32>, vector<2x128xf32> -> vector<2x128xf32>
    %120 = arith.addf %118, %119 : vector<2x128xf32>
    %121 = arith.negf %120 : vector<2x128xf32>
    %122 = math.exp %121 : vector<2x128xf32>
    %cst_24 = arith.constant 1.000000e+00 : f32
    %123 = vector.broadcast %cst_24 : f32 to vector<2x128xf32>
    %124 = arith.addf %123, %122 : vector<2x128xf32>
    %125 = arith.divf %123, %124 : vector<2x128xf32>
    %126 = math.tanh %120 : vector<2x128xf32>
    %127 = vector.extract_strided_slice %125 {offsets = [0, 0], sizes = [2, 32], strides = [1, 1]} : vector<2x128xf32> to vector<2x32xf32>
    %128 = vector.extract_strided_slice %125 {offsets = [0, 32], sizes = [2, 32], strides = [1, 1]} : vector<2x128xf32> to vector<2x32xf32>
    %129 = vector.extract_strided_slice %126 {offsets = [0, 64], sizes = [2, 32], strides = [1, 1]} : vector<2x128xf32> to vector<2x32xf32>
    %130 = vector.extract_strided_slice %125 {offsets = [0, 96], sizes = [2, 32], strides = [1, 1]} : vector<2x128xf32> to vector<2x32xf32>
    %131 = arith.mulf %128, %113 : vector<2x32xf32>
    %132 = arith.mulf %127, %129 : vector<2x32xf32>
    %133 = arith.addf %131, %132 : vector<2x32xf32>
    %134 = math.tanh %133 : vector<2x32xf32>
    %135 = arith.mulf %130, %134 : vector<2x32xf32>
    %136 = vector.extract_strided_slice %12 {offsets = [6, 0], sizes = [1, 128], strides = [1, 1]} : vector<32x128xf32> to vector<1x128xf32>
    %137 = vector.extract_strided_slice %12 {offsets = [22, 0], sizes = [1, 128], strides = [1, 1]} : vector<32x128xf32> to vector<1x128xf32>
    %138 = tpu.concatenate %136, %137 in 0 : vector<1x128xf32>, vector<1x128xf32> -> vector<2x128xf32>
    %cst_25 = arith.constant dense<0.000000e+00> : vector<2x128xf32>
    %139 = tpu.matmul %135, %13, %cst_25 {dimension_numbers = #tpu.dot_dimension_numbers<[1], [0], [0], [1], [0, 0, 1, 1], [], []>} : vector<2x32xf32>, vector<32x128xf32>, vector<2x128xf32> -> vector<2x128xf32>
    %140 = arith.addf %138, %139 : vector<2x128xf32>
    %141 = arith.negf %140 : vector<2x128xf32>
    %142 = math.exp %141 : vector<2x128xf32>
    %cst_26 = arith.constant 1.000000e+00 : f32
    %143 = vector.broadcast %cst_26 : f32 to vector<2x128xf32>
    %144 = arith.addf %143, %142 : vector<2x128xf32>
    %145 = arith.divf %143, %144 : vector<2x128xf32>
    %146 = math.tanh %140 : vector<2x128xf32>
    %147 = vector.extract_strided_slice %145 {offsets = [0, 0], sizes = [2, 32], strides = [1, 1]} : vector<2x128xf32> to vector<2x32xf32>
    %148 = vector.extract_strided_slice %145 {offsets = [0, 32], sizes = [2, 32], strides = [1, 1]} : vector<2x128xf32> to vector<2x32xf32>
    %149 = vector.extract_strided_slice %146 {offsets = [0, 64], sizes = [2, 32], strides = [1, 1]} : vector<2x128xf32> to vector<2x32xf32>
    %150 = vector.extract_strided_slice %145 {offsets = [0, 96], sizes = [2, 32], strides = [1, 1]} : vector<2x128xf32> to vector<2x32xf32>
    %151 = arith.mulf %148, %133 : vector<2x32xf32>
    %152 = arith.mulf %147, %149 : vector<2x32xf32>
    %153 = arith.addf %151, %152 : vector<2x32xf32>
    %154 = math.tanh %153 : vector<2x32xf32>
    %155 = arith.mulf %150, %154 : vector<2x32xf32>
    %156 = vector.extract_strided_slice %12 {offsets = [7, 0], sizes = [1, 128], strides = [1, 1]} : vector<32x128xf32> to vector<1x128xf32>
    %157 = vector.extract_strided_slice %12 {offsets = [23, 0], sizes = [1, 128], strides = [1, 1]} : vector<32x128xf32> to vector<1x128xf32>
    %158 = tpu.concatenate %156, %157 in 0 : vector<1x128xf32>, vector<1x128xf32> -> vector<2x128xf32>
    %cst_27 = arith.constant dense<0.000000e+00> : vector<2x128xf32>
    %159 = tpu.matmul %155, %13, %cst_27 {dimension_numbers = #tpu.dot_dimension_numbers<[1], [0], [0], [1], [0, 0, 1, 1], [], []>} : vector<2x32xf32>, vector<32x128xf32>, vector<2x128xf32> -> vector<2x128xf32>
    %160 = arith.addf %158, %159 : vector<2x128xf32>
    %161 = arith.negf %160 : vector<2x128xf32>
    %162 = math.exp %161 : vector<2x128xf32>
    %cst_28 = arith.constant 1.000000e+00 : f32
    %163 = vector.broadcast %cst_28 : f32 to vector<2x128xf32>
    %164 = arith.addf %163, %162 : vector<2x128xf32>
    %165 = arith.divf %163, %164 : vector<2x128xf32>
    %166 = math.tanh %160 : vector<2x128xf32>
    %167 = vector.extract_strided_slice %165 {offsets = [0, 0], sizes = [2, 32], strides = [1, 1]} : vector<2x128xf32> to vector<2x32xf32>
    %168 = vector.extract_strided_slice %165 {offsets = [0, 32], sizes = [2, 32], strides = [1, 1]} : vector<2x128xf32> to vector<2x32xf32>
    %169 = vector.extract_strided_slice %166 {offsets = [0, 64], sizes = [2, 32], strides = [1, 1]} : vector<2x128xf32> to vector<2x32xf32>
    %170 = vector.extract_strided_slice %165 {offsets = [0, 96], sizes = [2, 32], strides = [1, 1]} : vector<2x128xf32> to vector<2x32xf32>
    %171 = arith.mulf %168, %153 : vector<2x32xf32>
    %172 = arith.mulf %167, %169 : vector<2x32xf32>
    %173 = arith.addf %171, %172 : vector<2x32xf32>
    %174 = math.tanh %173 : vector<2x32xf32>
    %175 = arith.mulf %170, %174 : vector<2x32xf32>
    %176 = vector.extract_strided_slice %12 {offsets = [8, 0], sizes = [1, 128], strides = [1, 1]} : vector<32x128xf32> to vector<1x128xf32>
    %177 = vector.extract_strided_slice %12 {offsets = [24, 0], sizes = [1, 128], strides = [1, 1]} : vector<32x128xf32> to vector<1x128xf32>
    %178 = tpu.concatenate %176, %177 in 0 : vector<1x128xf32>, vector<1x128xf32> -> vector<2x128xf32>
    %cst_29 = arith.constant dense<0.000000e+00> : vector<2x128xf32>
    %179 = tpu.matmul %175, %13, %cst_29 {dimension_numbers = #tpu.dot_dimension_numbers<[1], [0], [0], [1], [0, 0, 1, 1], [], []>} : vector<2x32xf32>, vector<32x128xf32>, vector<2x128xf32> -> vector<2x128xf32>
    %180 = arith.addf %178, %179 : vector<2x128xf32>
    %181 = arith.negf %180 : vector<2x128xf32>
    %182 = math.exp %181 : vector<2x128xf32>
    %cst_30 = arith.constant 1.000000e+00 : f32
    %183 = vector.broadcast %cst_30 : f32 to vector<2x128xf32>
    %184 = arith.addf %183, %182 : vector<2x128xf32>
    %185 = arith.divf %183, %184 : vector<2x128xf32>
    %186 = math.tanh %180 : vector<2x128xf32>
    %187 = vector.extract_strided_slice %185 {offsets = [0, 0], sizes = [2, 32], strides = [1, 1]} : vector<2x128xf32> to vector<2x32xf32>
    %188 = vector.extract_strided_slice %185 {offsets = [0, 32], sizes = [2, 32], strides = [1, 1]} : vector<2x128xf32> to vector<2x32xf32>
    %189 = vector.extract_strided_slice %186 {offsets = [0, 64], sizes = [2, 32], strides = [1, 1]} : vector<2x128xf32> to vector<2x32xf32>
    %190 = vector.extract_strided_slice %185 {offsets = [0, 96], sizes = [2, 32], strides = [1, 1]} : vector<2x128xf32> to vector<2x32xf32>
    %191 = arith.mulf %188, %173 : vector<2x32xf32>
    %192 = arith.mulf %187, %189 : vector<2x32xf32>
    %193 = arith.addf %191, %192 : vector<2x32xf32>
    %194 = math.tanh %193 : vector<2x32xf32>
    %195 = arith.mulf %190, %194 : vector<2x32xf32>
    %196 = vector.extract_strided_slice %12 {offsets = [9, 0], sizes = [1, 128], strides = [1, 1]} : vector<32x128xf32> to vector<1x128xf32>
    %197 = vector.extract_strided_slice %12 {offsets = [25, 0], sizes = [1, 128], strides = [1, 1]} : vector<32x128xf32> to vector<1x128xf32>
    %198 = tpu.concatenate %196, %197 in 0 : vector<1x128xf32>, vector<1x128xf32> -> vector<2x128xf32>
    %cst_31 = arith.constant dense<0.000000e+00> : vector<2x128xf32>
    %199 = tpu.matmul %195, %13, %cst_31 {dimension_numbers = #tpu.dot_dimension_numbers<[1], [0], [0], [1], [0, 0, 1, 1], [], []>} : vector<2x32xf32>, vector<32x128xf32>, vector<2x128xf32> -> vector<2x128xf32>
    %200 = arith.addf %198, %199 : vector<2x128xf32>
    %201 = arith.negf %200 : vector<2x128xf32>
    %202 = math.exp %201 : vector<2x128xf32>
    %cst_32 = arith.constant 1.000000e+00 : f32
    %203 = vector.broadcast %cst_32 : f32 to vector<2x128xf32>
    %204 = arith.addf %203, %202 : vector<2x128xf32>
    %205 = arith.divf %203, %204 : vector<2x128xf32>
    %206 = math.tanh %200 : vector<2x128xf32>
    %207 = vector.extract_strided_slice %205 {offsets = [0, 0], sizes = [2, 32], strides = [1, 1]} : vector<2x128xf32> to vector<2x32xf32>
    %208 = vector.extract_strided_slice %205 {offsets = [0, 32], sizes = [2, 32], strides = [1, 1]} : vector<2x128xf32> to vector<2x32xf32>
    %209 = vector.extract_strided_slice %206 {offsets = [0, 64], sizes = [2, 32], strides = [1, 1]} : vector<2x128xf32> to vector<2x32xf32>
    %210 = vector.extract_strided_slice %205 {offsets = [0, 96], sizes = [2, 32], strides = [1, 1]} : vector<2x128xf32> to vector<2x32xf32>
    %211 = arith.mulf %208, %193 : vector<2x32xf32>
    %212 = arith.mulf %207, %209 : vector<2x32xf32>
    %213 = arith.addf %211, %212 : vector<2x32xf32>
    %214 = math.tanh %213 : vector<2x32xf32>
    %215 = arith.mulf %210, %214 : vector<2x32xf32>
    %216 = vector.extract_strided_slice %12 {offsets = [10, 0], sizes = [1, 128], strides = [1, 1]} : vector<32x128xf32> to vector<1x128xf32>
    %217 = vector.extract_strided_slice %12 {offsets = [26, 0], sizes = [1, 128], strides = [1, 1]} : vector<32x128xf32> to vector<1x128xf32>
    %218 = tpu.concatenate %216, %217 in 0 : vector<1x128xf32>, vector<1x128xf32> -> vector<2x128xf32>
    %cst_33 = arith.constant dense<0.000000e+00> : vector<2x128xf32>
    %219 = tpu.matmul %215, %13, %cst_33 {dimension_numbers = #tpu.dot_dimension_numbers<[1], [0], [0], [1], [0, 0, 1, 1], [], []>} : vector<2x32xf32>, vector<32x128xf32>, vector<2x128xf32> -> vector<2x128xf32>
    %220 = arith.addf %218, %219 : vector<2x128xf32>
    %221 = arith.negf %220 : vector<2x128xf32>
    %222 = math.exp %221 : vector<2x128xf32>
    %cst_34 = arith.constant 1.000000e+00 : f32
    %223 = vector.broadcast %cst_34 : f32 to vector<2x128xf32>
    %224 = arith.addf %223, %222 : vector<2x128xf32>
    %225 = arith.divf %223, %224 : vector<2x128xf32>
    %226 = math.tanh %220 : vector<2x128xf32>
    %227 = vector.extract_strided_slice %225 {offsets = [0, 0], sizes = [2, 32], strides = [1, 1]} : vector<2x128xf32> to vector<2x32xf32>
    %228 = vector.extract_strided_slice %225 {offsets = [0, 32], sizes = [2, 32], strides = [1, 1]} : vector<2x128xf32> to vector<2x32xf32>
    %229 = vector.extract_strided_slice %226 {offsets = [0, 64], sizes = [2, 32], strides = [1, 1]} : vector<2x128xf32> to vector<2x32xf32>
    %230 = vector.extract_strided_slice %225 {offsets = [0, 96], sizes = [2, 32], strides = [1, 1]} : vector<2x128xf32> to vector<2x32xf32>
    %231 = arith.mulf %228, %213 : vector<2x32xf32>
    %232 = arith.mulf %227, %229 : vector<2x32xf32>
    %233 = arith.addf %231, %232 : vector<2x32xf32>
    %234 = math.tanh %233 : vector<2x32xf32>
    %235 = arith.mulf %230, %234 : vector<2x32xf32>
    %236 = vector.extract_strided_slice %12 {offsets = [11, 0], sizes = [1, 128], strides = [1, 1]} : vector<32x128xf32> to vector<1x128xf32>
    %237 = vector.extract_strided_slice %12 {offsets = [27, 0], sizes = [1, 128], strides = [1, 1]} : vector<32x128xf32> to vector<1x128xf32>
    %238 = tpu.concatenate %236, %237 in 0 : vector<1x128xf32>, vector<1x128xf32> -> vector<2x128xf32>
    %cst_35 = arith.constant dense<0.000000e+00> : vector<2x128xf32>
    %239 = tpu.matmul %235, %13, %cst_35 {dimension_numbers = #tpu.dot_dimension_numbers<[1], [0], [0], [1], [0, 0, 1, 1], [], []>} : vector<2x32xf32>, vector<32x128xf32>, vector<2x128xf32> -> vector<2x128xf32>
    %240 = arith.addf %238, %239 : vector<2x128xf32>
    %241 = arith.negf %240 : vector<2x128xf32>
    %242 = math.exp %241 : vector<2x128xf32>
    %cst_36 = arith.constant 1.000000e+00 : f32
    %243 = vector.broadcast %cst_36 : f32 to vector<2x128xf32>
    %244 = arith.addf %243, %242 : vector<2x128xf32>
    %245 = arith.divf %243, %244 : vector<2x128xf32>
    %246 = math.tanh %240 : vector<2x128xf32>
    %247 = vector.extract_strided_slice %245 {offsets = [0, 0], sizes = [2, 32], strides = [1, 1]} : vector<2x128xf32> to vector<2x32xf32>
    %248 = vector.extract_strided_slice %245 {offsets = [0, 32], sizes = [2, 32], strides = [1, 1]} : vector<2x128xf32> to vector<2x32xf32>
    %249 = vector.extract_strided_slice %246 {offsets = [0, 64], sizes = [2, 32], strides = [1, 1]} : vector<2x128xf32> to vector<2x32xf32>
    %250 = vector.extract_strided_slice %245 {offsets = [0, 96], sizes = [2, 32], strides = [1, 1]} : vector<2x128xf32> to vector<2x32xf32>
    %251 = arith.mulf %248, %233 : vector<2x32xf32>
    %252 = arith.mulf %247, %249 : vector<2x32xf32>
    %253 = arith.addf %251, %252 : vector<2x32xf32>
    %254 = math.tanh %253 : vector<2x32xf32>
    %255 = arith.mulf %250, %254 : vector<2x32xf32>
    %256 = vector.extract_strided_slice %12 {offsets = [12, 0], sizes = [1, 128], strides = [1, 1]} : vector<32x128xf32> to vector<1x128xf32>
    %257 = vector.extract_strided_slice %12 {offsets = [28, 0], sizes = [1, 128], strides = [1, 1]} : vector<32x128xf32> to vector<1x128xf32>
    %258 = tpu.concatenate %256, %257 in 0 : vector<1x128xf32>, vector<1x128xf32> -> vector<2x128xf32>
    %cst_37 = arith.constant dense<0.000000e+00> : vector<2x128xf32>
    %259 = tpu.matmul %255, %13, %cst_37 {dimension_numbers = #tpu.dot_dimension_numbers<[1], [0], [0], [1], [0, 0, 1, 1], [], []>} : vector<2x32xf32>, vector<32x128xf32>, vector<2x128xf32> -> vector<2x128xf32>
    %260 = arith.addf %258, %259 : vector<2x128xf32>
    %261 = arith.negf %260 : vector<2x128xf32>
    %262 = math.exp %261 : vector<2x128xf32>
    %cst_38 = arith.constant 1.000000e+00 : f32
    %263 = vector.broadcast %cst_38 : f32 to vector<2x128xf32>
    %264 = arith.addf %263, %262 : vector<2x128xf32>
    %265 = arith.divf %263, %264 : vector<2x128xf32>
    %266 = math.tanh %260 : vector<2x128xf32>
    %267 = vector.extract_strided_slice %265 {offsets = [0, 0], sizes = [2, 32], strides = [1, 1]} : vector<2x128xf32> to vector<2x32xf32>
    %268 = vector.extract_strided_slice %265 {offsets = [0, 32], sizes = [2, 32], strides = [1, 1]} : vector<2x128xf32> to vector<2x32xf32>
    %269 = vector.extract_strided_slice %266 {offsets = [0, 64], sizes = [2, 32], strides = [1, 1]} : vector<2x128xf32> to vector<2x32xf32>
    %270 = vector.extract_strided_slice %265 {offsets = [0, 96], sizes = [2, 32], strides = [1, 1]} : vector<2x128xf32> to vector<2x32xf32>
    %271 = arith.mulf %268, %253 : vector<2x32xf32>
    %272 = arith.mulf %267, %269 : vector<2x32xf32>
    %273 = arith.addf %271, %272 : vector<2x32xf32>
    %274 = math.tanh %273 : vector<2x32xf32>
    %275 = arith.mulf %270, %274 : vector<2x32xf32>
    %276 = vector.extract_strided_slice %12 {offsets = [13, 0], sizes = [1, 128], strides = [1, 1]} : vector<32x128xf32> to vector<1x128xf32>
    %277 = vector.extract_strided_slice %12 {offsets = [29, 0], sizes = [1, 128], strides = [1, 1]} : vector<32x128xf32> to vector<1x128xf32>
    %278 = tpu.concatenate %276, %277 in 0 : vector<1x128xf32>, vector<1x128xf32> -> vector<2x128xf32>
    %cst_39 = arith.constant dense<0.000000e+00> : vector<2x128xf32>
    %279 = tpu.matmul %275, %13, %cst_39 {dimension_numbers = #tpu.dot_dimension_numbers<[1], [0], [0], [1], [0, 0, 1, 1], [], []>} : vector<2x32xf32>, vector<32x128xf32>, vector<2x128xf32> -> vector<2x128xf32>
    %280 = arith.addf %278, %279 : vector<2x128xf32>
    %281 = arith.negf %280 : vector<2x128xf32>
    %282 = math.exp %281 : vector<2x128xf32>
    %cst_40 = arith.constant 1.000000e+00 : f32
    %283 = vector.broadcast %cst_40 : f32 to vector<2x128xf32>
    %284 = arith.addf %283, %282 : vector<2x128xf32>
    %285 = arith.divf %283, %284 : vector<2x128xf32>
    %286 = math.tanh %280 : vector<2x128xf32>
    %287 = vector.extract_strided_slice %285 {offsets = [0, 0], sizes = [2, 32], strides = [1, 1]} : vector<2x128xf32> to vector<2x32xf32>
    %288 = vector.extract_strided_slice %285 {offsets = [0, 32], sizes = [2, 32], strides = [1, 1]} : vector<2x128xf32> to vector<2x32xf32>
    %289 = vector.extract_strided_slice %286 {offsets = [0, 64], sizes = [2, 32], strides = [1, 1]} : vector<2x128xf32> to vector<2x32xf32>
    %290 = vector.extract_strided_slice %285 {offsets = [0, 96], sizes = [2, 32], strides = [1, 1]} : vector<2x128xf32> to vector<2x32xf32>
    %291 = arith.mulf %288, %273 : vector<2x32xf32>
    %292 = arith.mulf %287, %289 : vector<2x32xf32>
    %293 = arith.addf %291, %292 : vector<2x32xf32>
    %294 = math.tanh %293 : vector<2x32xf32>
    %295 = arith.mulf %290, %294 : vector<2x32xf32>
    %296 = vector.extract_strided_slice %12 {offsets = [14, 0], sizes = [1, 128], strides = [1, 1]} : vector<32x128xf32> to vector<1x128xf32>
    %297 = vector.extract_strided_slice %12 {offsets = [30, 0], sizes = [1, 128], strides = [1, 1]} : vector<32x128xf32> to vector<1x128xf32>
    %298 = tpu.concatenate %296, %297 in 0 : vector<1x128xf32>, vector<1x128xf32> -> vector<2x128xf32>
    %cst_41 = arith.constant dense<0.000000e+00> : vector<2x128xf32>
    %299 = tpu.matmul %295, %13, %cst_41 {dimension_numbers = #tpu.dot_dimension_numbers<[1], [0], [0], [1], [0, 0, 1, 1], [], []>} : vector<2x32xf32>, vector<32x128xf32>, vector<2x128xf32> -> vector<2x128xf32>
    %300 = arith.addf %298, %299 : vector<2x128xf32>
    %301 = arith.negf %300 : vector<2x128xf32>
    %302 = math.exp %301 : vector<2x128xf32>
    %cst_42 = arith.constant 1.000000e+00 : f32
    %303 = vector.broadcast %cst_42 : f32 to vector<2x128xf32>
    %304 = arith.addf %303, %302 : vector<2x128xf32>
    %305 = arith.divf %303, %304 : vector<2x128xf32>
    %306 = math.tanh %300 : vector<2x128xf32>
    %307 = vector.extract_strided_slice %305 {offsets = [0, 0], sizes = [2, 32], strides = [1, 1]} : vector<2x128xf32> to vector<2x32xf32>
    %308 = vector.extract_strided_slice %305 {offsets = [0, 32], sizes = [2, 32], strides = [1, 1]} : vector<2x128xf32> to vector<2x32xf32>
    %309 = vector.extract_strided_slice %306 {offsets = [0, 64], sizes = [2, 32], strides = [1, 1]} : vector<2x128xf32> to vector<2x32xf32>
    %310 = vector.extract_strided_slice %305 {offsets = [0, 96], sizes = [2, 32], strides = [1, 1]} : vector<2x128xf32> to vector<2x32xf32>
    %311 = arith.mulf %308, %293 : vector<2x32xf32>
    %312 = arith.mulf %307, %309 : vector<2x32xf32>
    %313 = arith.addf %311, %312 : vector<2x32xf32>
    %314 = math.tanh %313 : vector<2x32xf32>
    %315 = arith.mulf %310, %314 : vector<2x32xf32>
    %316 = vector.extract_strided_slice %12 {offsets = [15, 0], sizes = [1, 128], strides = [1, 1]} : vector<32x128xf32> to vector<1x128xf32>
    %317 = vector.extract_strided_slice %12 {offsets = [31, 0], sizes = [1, 128], strides = [1, 1]} : vector<32x128xf32> to vector<1x128xf32>
    %318 = tpu.concatenate %316, %317 in 0 : vector<1x128xf32>, vector<1x128xf32> -> vector<2x128xf32>
    %cst_43 = arith.constant dense<0.000000e+00> : vector<2x128xf32>
    %319 = tpu.matmul %315, %13, %cst_43 {dimension_numbers = #tpu.dot_dimension_numbers<[1], [0], [0], [1], [0, 0, 1, 1], [], []>} : vector<2x32xf32>, vector<32x128xf32>, vector<2x128xf32> -> vector<2x128xf32>
    %320 = arith.addf %318, %319 : vector<2x128xf32>
    %321 = arith.negf %320 : vector<2x128xf32>
    %322 = math.exp %321 : vector<2x128xf32>
    %cst_44 = arith.constant 1.000000e+00 : f32
    %323 = vector.broadcast %cst_44 : f32 to vector<2x128xf32>
    %324 = arith.addf %323, %322 : vector<2x128xf32>
    %325 = arith.divf %323, %324 : vector<2x128xf32>
    %326 = math.tanh %320 : vector<2x128xf32>
    %327 = vector.extract_strided_slice %325 {offsets = [0, 0], sizes = [2, 32], strides = [1, 1]} : vector<2x128xf32> to vector<2x32xf32>
    %328 = vector.extract_strided_slice %325 {offsets = [0, 32], sizes = [2, 32], strides = [1, 1]} : vector<2x128xf32> to vector<2x32xf32>
    %329 = vector.extract_strided_slice %326 {offsets = [0, 64], sizes = [2, 32], strides = [1, 1]} : vector<2x128xf32> to vector<2x32xf32>
    %330 = vector.extract_strided_slice %325 {offsets = [0, 96], sizes = [2, 32], strides = [1, 1]} : vector<2x128xf32> to vector<2x32xf32>
    %331 = arith.mulf %328, %313 : vector<2x32xf32>
    %332 = arith.mulf %327, %329 : vector<2x32xf32>
    %333 = arith.addf %331, %332 : vector<2x32xf32>
    %334 = math.tanh %333 : vector<2x32xf32>
    %335 = arith.mulf %330, %334 : vector<2x32xf32>
    %c0_45 = arith.constant 0 : index
    %c0_46 = arith.constant 0 : index
    %336 = vector.load %arg4[%c0_45, %c0_46] : memref<32x8xf32, #tpu.memory_space<vmem>>, vector<32x8xf32>
    %cst_47 = arith.constant dense<0.000000e+00> : vector<2x8xf32>
    %337 = tpu.matmul %335, %336, %cst_47 {dimension_numbers = #tpu.dot_dimension_numbers<[1], [0], [0], [1], [0, 0, 1, 1], [], []>} : vector<2x32xf32>, vector<32x8xf32>, vector<2x8xf32> -> vector<2x8xf32>
    %c0_48 = arith.constant 0 : index
    %c0_49 = arith.constant 0 : index
    %338 = vector.load %arg5[%c0_48, %c0_49] : memref<1x8xf32, #tpu.memory_space<vmem>>, vector<1x8xf32>
    %339 = vector.broadcast %338 : vector<1x8xf32> to vector<2x8xf32>
    %340 = arith.addf %337, %339 : vector<2x8xf32>
    %c0_50 = arith.constant 0 : index
    %c0_51 = arith.constant 0 : index
    %341 = vector.load %arg6[%c0_50, %c0_51] : memref<2x8xf32, #tpu.memory_space<vmem>>, vector<2x8xf32>
    tpu.vector_store %arg6[%c0_50, %c0_51], %340 {strides = array<i32>} : memref<2x8xf32, #tpu.memory_space<vmem>>, vector<2x8xf32>,
    return
  }
}

</mosaic_0001>

<llo_original>
// kernel: single_lstm_forward.1
$region0: #{single_lstm_forward.1}
  #allocation0 [shape = 'u32[]', space=smem, size = 0x4, offset = 0x4, fixed_abs, tag = 'smem constant byte address 0x4 - core index']
  #allocation1 [shape = 'u32[72,128]{1,0:T(1,128)}', space=vmem, size = 0x9000, scoped, tag = 'internal scratch']
  %s0 = inlined_call_operand.vmem [shape: f32[2,40,16], index: 0, kind: input, shape index: {}]
  %s1 = inlined_call_operand.vmem [shape: f32[128,40], index: 1, kind: input, shape index: {}]
  %s2 = inlined_call_operand.vmem [shape: f32[32,128], index: 2, kind: input, shape index: {}]
  %s3 = inlined_call_operand.vmem [shape: f32[1,128], index: 3, kind: input, shape index: {}]
  %s4 = inlined_call_operand.vmem [shape: f32[32,8], index: 4, kind: input, shape index: {}]
  %s5 = inlined_call_operand.vmem [shape: f32[1,8], index: 5, kind: input, shape index: {}]
  %s6 = inlined_call_operand.hbm [shape: f32[2,8], index: 6, kind: output, shape index: {}]
  %s7 = sld [smem:[#allocation0]]
  $region34: #{single_lstm_forward.1} parent=0
    _
  %s9 = ssub.s32 1, %s7
  %s10 = scalar_select 0, %s9, %s7
  $region1: #{single_lstm_forward.1} parent=0
    #allocation2 [shape = 'u8[1024]{0}', space=vmem, size = 0x400, scoped, tag = 'output window, operand 0, single buffered']
    #allocation3 [shape = 's32[1]{0}', space=sflag, size = 0x4, scoped, tag = 'scoped memory for single_lstm_forward.1']
    %11 = vsyncpa [#allocation3], 0
    // Predicated region
    $region2: #{single_lstm_forward.1} parent=1 // pred_check
      _
    $region3: #{single_lstm_forward.1} parent=1 // pred_check_branch
      %13 = sbr.rel (0) target = $region5
    $region4: #{single_lstm_forward.1} parent=1 // pred_region
      _
    $region5: #{single_lstm_forward.1} parent=1 // pred_fallthru
      _
    // Predicated region
    $region6: #{single_lstm_forward.1} parent=1 // pred_check
      _
    $region7: #{single_lstm_forward.1} parent=1 // pred_check_branch
      %15 = sbr.rel (0) target = $region9
    $region8: #{single_lstm_forward.1} parent=1 // pred_region
      _
    $region9: #{single_lstm_forward.1} parent=1 // pred_fallthru
      _
    // Predicated region
    $region10: #{single_lstm_forward.1} parent=1 // pred_check
      _
    $region11: #{single_lstm_forward.1} parent=1 // pred_check_branch
      %17 = sbr.rel (0) target = $region13
    $region12: #{single_lstm_forward.1} parent=1 // pred_region
      _
    $region13: #{single_lstm_forward.1} parent=1 // pred_fallthru
      _
    // Predicated region
    $region14: #{single_lstm_forward.1} parent=1 // pred_check
      _
    $region15: #{single_lstm_forward.1} parent=1 // pred_check_branch
      %19 = sbr.rel (0) target = $region17
    $region16: #{single_lstm_forward.1} parent=1 // pred_region
      _
    $region17: #{single_lstm_forward.1} parent=1 // pred_fallthru
      _
    // Predicated region
    $region18: #{single_lstm_forward.1} parent=1 // pred_check
      _
    $region19: #{single_lstm_forward.1} parent=1 // pred_check_branch
      %21 = sbr.rel (0) target = $region21
    $region20: #{single_lstm_forward.1} parent=1 // pred_region
      _
    $region21: #{single_lstm_forward.1} parent=1 // pred_fallthru
      _
    // Predicated region
    $region22: #{single_lstm_forward.1} parent=1 // pred_check
      _
    $region23: #{single_lstm_forward.1} parent=1 // pred_check_branch
      %23 = sbr.rel (0) target = $region25
    $region24: #{single_lstm_forward.1} parent=1 // pred_region
      _
    $region25: #{single_lstm_forward.1} parent=1 // pred_fallthru
      _
    %v24 = vld [vmem:[%s1] sm:$0xff]
    %v25 = vld [vmem:[%s1 + $0x8] sm:$0xff]
    %v26 = vld [vmem:[%s1 + $0x10] sm:$0xff]
    %v27 = vld [vmem:[%s1 + $0x18] sm:$0xff]
    %v28 = vld [vmem:[%s1 + $0x20] sm:$0xff]
    %v29 = vld [vmem:[%s1 + $0x28] sm:$0xff]
    %v30 = vld [vmem:[%s1 + $0x30] sm:$0xff]
    %v31 = vld [vmem:[%s1 + $0x38] sm:$0xff]
    %v32 = vld [vmem:[%s1 + $0x40] sm:$0xff]
    %v33 = vld [vmem:[%s1 + $0x48] sm:$0xff]
    %v34 = vld [vmem:[%s1 + $0x50] sm:$0xff]
    %v35 = vld [vmem:[%s1 + $0x58] sm:$0xff]
    %v36 = vld [vmem:[%s1 + $0x60] sm:$0xff]
    %v37 = vld [vmem:[%s1 + $0x68] sm:$0xff]
    %v38 = vld [vmem:[%s1 + $0x70] sm:$0xff]
    %v39 = vld [vmem:[%s1 + $0x78] sm:$0xff]
    %v40 = vld [vmem:[%s0] sm:$0xff]
    %v41 = vld [vmem:[%s0 + $0x8] sm:$0xff]
    %v42 = vld [vmem:[%s0 + $0x10] sm:$0xff]
    %v43 = vld [vmem:[%s0 + $0x18] sm:$0xff]
    %v44 = vld [vmem:[%s0 + $0x20] sm:$0xff]
    %vm45 = vcmask 326656
    %v47 = vsel %vm45, %v24, 0
    %v50 = vsel %vm45, %v25, 0
    %v53 = vsel %vm45, %v26, 0
    %v56 = vsel %vm45, %v27, 0
    %v59 = vsel %vm45, %v28, 0
    %v62 = vsel %vm45, %v29, 0
    %v65 = vsel %vm45, %v30, 0
    %v68 = vsel %vm45, %v31, 0
    %v71 = vsel %vm45, %v32, 0
    %v74 = vsel %vm45, %v33, 0
    %v77 = vsel %vm45, %v34, 0
    %v80 = vsel %vm45, %v35, 0
    %v83 = vsel %vm45, %v36, 0
    %v86 = vsel %vm45, %v37, 0
    %v89 = vsel %vm45, %v38, 0
    %v92 = vsel %vm45, %v39, 0
    %94 = vmatpush.msra.mxu0 0.0
    %95 = vmatpush.msra.mxu0 0.0
    %96 = vmatpush.msra.mxu0 0.0
    %97 = vmatpush.msra.mxu0 0.0
    %98 = vmatpush.msra.mxu0 0.0
    %99 = vmatpush.msra.mxu0 0.0
    %100 = vmatpush.msra.mxu0 0.0
    %101 = vmatpush.msra.mxu0 0.0
    %102 = vmatpush.msra.mxu0 0.0
    %103 = vmatpush.msra.mxu0 0.0
    %104 = vmatpush.msra.mxu0 0.0
    %105 = vmatpush.msra.mxu0 %v44
    %106 = vmatpush.msra.mxu0 %v43
    %107 = vmatpush.msra.mxu0 %v42
    %108 = vmatpush.msra.mxu0 %v41
    %109 = vmatpush.msra.mxu0 %v40
    %110 = vmatmul.f32.gmra.mxu0 %v47
    %v111 = vpop.f32.mrf.mxu0
    %v112 = vadd.f32 0.0, %v111
    %113 = vmatmul.f32.gmra.mxu0 %v50
    %v114 = vpop.f32.mrf.mxu0
    %v115 = vadd.f32 0.0, %v114
    %116 = vmatmul.f32.gmra.mxu0 %v53
    %v117 = vpop.f32.mrf.mxu0
    %v118 = vadd.f32 0.0, %v117
    %119 = vmatmul.f32.gmra.mxu0 %v56
    %v120 = vpop.f32.mrf.mxu0
    %v121 = vadd.f32 0.0, %v120
    %122 = vmatmul.f32.gmra.mxu0 %v59
    %v123 = vpop.f32.mrf.mxu0
    %v124 = vadd.f32 0.0, %v123
    %125 = vmatmul.f32.gmra.mxu0 %v62
    %v126 = vpop.f32.mrf.mxu0
    %v127 = vadd.f32 0.0, %v126
    %128 = vmatmul.f32.gmra.mxu0 %v65
    %v129 = vpop.f32.mrf.mxu0
    %v130 = vadd.f32 0.0, %v129
    %131 = vmatmul.f32.gmra.mxu0 %v68
    %v132 = vpop.f32.mrf.mxu0
    %v133 = vadd.f32 0.0, %v132
    %134 = vmatmul.f32.gmra.mxu0 %v71
    %v135 = vpop.f32.mrf.mxu0
    %v136 = vadd.f32 0.0, %v135
    %137 = vmatmul.f32.gmra.mxu0 %v74
    %v138 = vpop.f32.mrf.mxu0
    %v139 = vadd.f32 0.0, %v138
    %140 = vmatmul.f32.gmra.mxu0 %v77
    %v141 = vpop.f32.mrf.mxu0
    %v142 = vadd.f32 0.0, %v141
    %143 = vmatmul.f32.gmra.mxu0 %v80
    %v144 = vpop.f32.mrf.mxu0
    %v145 = vadd.f32 0.0, %v144
    %146 = vmatmul.f32.gmra.mxu0 %v83
    %v147 = vpop.f32.mrf.mxu0
    %v148 = vadd.f32 0.0, %v147
    %149 = vmatmul.f32.gmra.mxu0 %v86
    %v150 = vpop.f32.mrf.mxu0
    %v151 = vadd.f32 0.0, %v150
    %152 = vmatmul.f32.gmra.mxu0 %v89
    %v153 = vpop.f32.mrf.mxu0
    %v154 = vadd.f32 0.0, %v153
    %155 = vmatmul.f32.gmra.mxu0 %v92
    %v156 = vpop.f32.mrf.mxu0
    %v157 = vadd.f32 0.0, %v156
    %158 = vdwg.mxu0
    %159 = vxpose.xlu0.b32.start [1/16] %v112, 128
    %160 = vxpose.xlu0.b32.cont [2/16] %v115, 128
    %161 = vxpose.xlu0.b32.cont [3/16] %v118, 128
    %162 = vxpose.xlu0.b32.cont [4/16] %v121, 128
    %163 = vxpose.xlu0.b32.cont [5/16] %v124, 128
    %164 = vxpose.xlu0.b32.cont [6/16] %v127, 128
    %165 = vxpose.xlu0.b32.cont [7/16] %v130, 128
    %166 = vxpose.xlu0.b32.cont [8/16] %v133, 128
    %167 = vxpose.xlu0.b32.cont [9/16] %v136, 128
    %168 = vxpose.xlu0.b32.cont [10/16] %v139, 128
    %169 = vxpose.xlu0.b32.cont [11/16] %v142, 128
    %170 = vxpose.xlu0.b32.cont [12/16] %v145, 128
    %171 = vxpose.xlu0.b32.cont [13/16] %v148, 128
    %172 = vxpose.xlu0.b32.cont [14/16] %v151, 128
    %173 = vxpose.xlu0.b32.cont [15/16] %v154, 128
    %174 = vxpose.xlu0.b32.end [16/16] %v157, 128
    %v175 = vpop.trf.xlu0
    %v176 = vpop.trf.xlu0
    %v177 = vpop.trf.xlu0
    %v178 = vpop.trf.xlu0
    %v179 = vpop.trf.xlu0
    %v180 = vpop.trf.xlu0
    %v181 = vpop.trf.xlu0
    %v182 = vpop.trf.xlu0
    %v183 = vpop.trf.xlu0
    %v184 = vpop.trf.xlu0
    %v185 = vpop.trf.xlu0
    %v186 = vpop.trf.xlu0
    %v187 = vpop.trf.xlu0
    %v188 = vpop.trf.xlu0
    %v189 = vpop.trf.xlu0
    %v190 = vpop.trf.xlu0
    %s191 = scalar_lea.vmem %s0, 40
    %v192 = vld [vmem:[%s191] sm:$0xff]
    %v193 = vld [vmem:[%s191 + $0x8] sm:$0xff]
    %v194 = vld [vmem:[%s191 + $0x10] sm:$0xff]
    %v195 = vld [vmem:[%s191 + $0x18] sm:$0xff]
    %v196 = vld [vmem:[%s191 + $0x20] sm:$0xff]
    %197 = vmatpush.msra.mxu0 0.0
    %198 = vmatpush.msra.mxu0 0.0
    %199 = vmatpush.msra.mxu0 0.0
    %200 = vmatpush.msra.mxu0 0.0
    %201 = vmatpush.msra.mxu0 0.0
    %202 = vmatpush.msra.mxu0 0.0
    %203 = vmatpush.msra.mxu0 0.0
    %204 = vmatpush.msra.mxu0 0.0
    %205 = vmatpush.msra.mxu0 0.0
    %206 = vmatpush.msra.mxu0 0.0
    %207 = vmatpush.msra.mxu0 0.0
    %208 = vmatpush.msra.mxu0 %v196
    %209 = vmatpush.msra.mxu0 %v195
    %210 = vmatpush.msra.mxu0 %v194
    %211 = vmatpush.msra.mxu0 %v193
    %212 = vmatpush.msra.mxu0 %v192
    %213 = vmatmul.f32.gmra.mxu0 %v47
    %v214 = vpop.f32.mrf.mxu0
    %v215 = vadd.f32 0.0, %v214
    %216 = vmatmul.f32.gmra.mxu0 %v50
    %v217 = vpop.f32.mrf.mxu0
    %v218 = vadd.f32 0.0, %v217
    %219 = vmatmul.f32.gmra.mxu0 %v53
    %v220 = vpop.f32.mrf.mxu0
    %v221 = vadd.f32 0.0, %v220
    %222 = vmatmul.f32.gmra.mxu0 %v56
    %v223 = vpop.f32.mrf.mxu0
    %v224 = vadd.f32 0.0, %v223
    %225 = vmatmul.f32.gmra.mxu0 %v59
    %v226 = vpop.f32.mrf.mxu0
    %v227 = vadd.f32 0.0, %v226
    %228 = vmatmul.f32.gmra.mxu0 %v62
    %v229 = vpop.f32.mrf.mxu0
    %v230 = vadd.f32 0.0, %v229
    %231 = vmatmul.f32.gmra.mxu0 %v65
    %v232 = vpop.f32.mrf.mxu0
    %v233 = vadd.f32 0.0, %v232
    %234 = vmatmul.f32.gmra.mxu0 %v68
    %v235 = vpop.f32.mrf.mxu0
    %v236 = vadd.f32 0.0, %v235
    %237 = vmatmul.f32.gmra.mxu0 %v71
    %v238 = vpop.f32.mrf.mxu0
    %v239 = vadd.f32 0.0, %v238
    %240 = vmatmul.f32.gmra.mxu0 %v74
    %v241 = vpop.f32.mrf.mxu0
    %v242 = vadd.f32 0.0, %v241
    %243 = vmatmul.f32.gmra.mxu0 %v77
    %v244 = vpop.f32.mrf.mxu0
    %v245 = vadd.f32 0.0, %v244
    %246 = vmatmul.f32.gmra.mxu0 %v80
    %v247 = vpop.f32.mrf.mxu0
    %v248 = vadd.f32 0.0, %v247
    %249 = vmatmul.f32.gmra.mxu0 %v83
    %v250 = vpop.f32.mrf.mxu0
    %v251 = vadd.f32 0.0, %v250
    %252 = vmatmul.f32.gmra.mxu0 %v86
    %v253 = vpop.f32.mrf.mxu0
    %v254 = vadd.f32 0.0, %v253
    %255 = vmatmul.f32.gmra.mxu0 %v89
    %v256 = vpop.f32.mrf.mxu0
    %v257 = vadd.f32 0.0, %v256
    %258 = vmatmul.f32.gmra.mxu0 %v92
    %v259 = vpop.f32.mrf.mxu0
    %v260 = vadd.f32 0.0, %v259
    %261 = vdwg.mxu0
    %262 = vxpose.xlu0.b32.start [1/16] %v215, 128
    %263 = vxpose.xlu0.b32.cont [2/16] %v218, 128
    %264 = vxpose.xlu0.b32.cont [3/16] %v221, 128
    %265 = vxpose.xlu0.b32.cont [4/16] %v224, 128
    %266 = vxpose.xlu0.b32.cont [5/16] %v227, 128
    %267 = vxpose.xlu0.b32.cont [6/16] %v230, 128
    %268 = vxpose.xlu0.b32.cont [7/16] %v233, 128
    %269 = vxpose.xlu0.b32.cont [8/16] %v236, 128
    %270 = vxpose.xlu0.b32.cont [9/16] %v239, 128
    %271 = vxpose.xlu0.b32.cont [10/16] %v242, 128
    %272 = vxpose.xlu0.b32.cont [11/16] %v245, 128
    %273 = vxpose.xlu0.b32.cont [12/16] %v248, 128
    %274 = vxpose.xlu0.b32.cont [13/16] %v251, 128
    %275 = vxpose.xlu0.b32.cont [14/16] %v254, 128
    %276 = vxpose.xlu0.b32.cont [15/16] %v257, 128
    %277 = vxpose.xlu0.b32.end [16/16] %v260, 128
    %v278 = vpop.trf.xlu0
    %v279 = vpop.trf.xlu0
    %v280 = vpop.trf.xlu0
    %v281 = vpop.trf.xlu0
    %v282 = vpop.trf.xlu0
    %v283 = vpop.trf.xlu0
    %v284 = vpop.trf.xlu0
    %v285 = vpop.trf.xlu0
    %v286 = vpop.trf.xlu0
    %v287 = vpop.trf.xlu0
    %v288 = vpop.trf.xlu0
    %v289 = vpop.trf.xlu0
    %v290 = vpop.trf.xlu0
    %v291 = vpop.trf.xlu0
    %v292 = vpop.trf.xlu0
    %v293 = vpop.trf.xlu0
    %v294 = vld [vmem:[%s3] sm:$0x1]
    %v296 = vperm.slane %v294, 0
    %v298 = vadd.f32 %v175, %v296
    %v299 = vadd.f32 %v176, %v296
    %v300 = vadd.f32 %v278, %v296
    %v301 = vadd.f32 %v279, %v296
    %v302 = vld [vmem:[%s2] sm:$0xff]
    %v303 = vld [vmem:[%s2 + $0x8] sm:$0xff]
    %v304 = vld [vmem:[%s2 + $0x10] sm:$0xff]
    %v305 = vld [vmem:[%s2 + $0x18] sm:$0xff]
    %v307 = vrot.slane %v300, 7
    %vm309 = vcmask 1040384
    %v310 = vsel %vm309, %v298, %v307
    %vm311 = vcmask 261120
    %v313 = vsel %vm311, 0.0, 0
    %315 = vmatpush.msra.mxu0 0.0
    %316 = vmatpush.msra.mxu0 0.0
    %317 = vmatpush.msra.mxu0 0.0
    %318 = vmatpush.msra.mxu0 0.0
    %319 = vmatpush.msra.mxu0 0.0
    %320 = vmatpush.msra.mxu0 0.0
    %321 = vmatpush.msra.mxu0 0.0
    %322 = vmatpush.msra.mxu0 0.0
    %323 = vmatpush.msra.mxu0 0.0
    %324 = vmatpush.msra.mxu0 0.0
    %325 = vmatpush.msra.mxu0 0.0
    %326 = vmatpush.msra.mxu0 0.0
    %327 = vmatpush.msra.mxu0 %v305
    %328 = vmatpush.msra.mxu0 %v304
    %329 = vmatpush.msra.mxu0 %v303
    %330 = vmatpush.msra.mxu0 %v302
    %331 = vmatmul.f32.gmra.mxu0 %v313
    %v332 = vpop.f32.mrf.mxu0
    %v333 = vadd.f32 0.0, %v332
    %334 = vdwg.mxu0
    %v335 = vadd.f32 %v310, %v333
    %v336 = vxor.u32 %v335, 2147483648
    %v337 = vmul.f32 %v336, 1.442695
    %v338 = vpow.pop %v337
    %v339 = vadd.f32 %v338, 1.0
    %v340 = vrcp.pop %v339
    %v341 = vmul.f32 %v339, %v340
    %v342 = vsub.f32 1.0, %v341
    %v343 = vmul.f32 %v340, %v342
    %v344 = vadd.f32 %v340, %v343
    %vm345 = vweird.f32 %v339
    %vm346 = vweird.f32 %v340
    %vm347 = vmor %vm345, %vm346
    %v348 = vsel %vm347, %v340, %v344
    %v349 = vand.u32 2147483647, %v339
    %vm350 = vcmp.eq.f32.partialorder %v349, 8.507059e+37
    %v351 = vand.u32 %v339, 2147483648
    %v352 = vor.u32 1.1754944e-38, %v351
    %v353 = vsel %vm350, %v352, %v348
    %v354 = vmul.f32 1.0, %v353
    %v355 = vtanh.pop %v335
    %v356 = vmul.f32 %v354, 0.0
    %358 = vrot.lane.b32.xlu0 %v355, 64
    %v359 = vpop.permute.xlu0 %358
    %v361 = vmul.f32 %v354, %v359
    %363 = vrot.lane.b32.xlu0 %v361, 32
    %v364 = vpop.permute.xlu0 %363
    %v366 = vadd.f32 %v356, %v364
    %v367 = vtanh.pop %v366
    %369 = vrot.lane.b32.xlu0 %v367, 64
    %v370 = vpop.permute.xlu0 %369
    %v372 = vmul.f32 %v354, %v370
    %v374 = vrot.slane %v298, 1
    %v376 = vsel %vm309, %v374, %v300
    %378 = vrot.lane.b32.xlu0 %v372, 32
    %v379 = vpop.permute.xlu0 %378
    %v380 = vsel %vm311, %v379, 0
    %382 = vmatpush.msra.mxu0 0.0
    %383 = vmatpush.msra.mxu0 0.0
    %384 = vmatpush.msra.mxu0 0.0
    %385 = vmatpush.msra.mxu0 0.0
    %386 = vmatpush.msra.mxu0 0.0
    %387 = vmatpush.msra.mxu0 0.0
    %388 = vmatpush.msra.mxu0 0.0
    %389 = vmatpush.msra.mxu0 0.0
    %390 = vmatpush.msra.mxu0 0.0
    %391 = vmatpush.msra.mxu0 0.0
    %392 = vmatpush.msra.mxu0 0.0
    %393 = vmatpush.msra.mxu0 0.0
    %394 = vmatpush.msra.mxu0 %v305
    %395 = vmatpush.msra.mxu0 %v304
    %396 = vmatpush.msra.mxu0 %v303
    %397 = vmatpush.msra.mxu0 %v302
    %398 = vmatmul.f32.gmra.mxu0 %v380
    %v399 = vpop.f32.mrf.mxu0
    %v400 = vadd.f32 0.0, %v399
    %401 = vdwg.mxu0
    %v402 = vadd.f32 %v376, %v400
    %v403 = vxor.u32 %v402, 2147483648
    %v404 = vmul.f32 %v403, 1.442695
    %v405 = vpow.pop %v404
    %v406 = vadd.f32 %v405, 1.0
    %v407 = vrcp.pop %v406
    %v408 = vmul.f32 %v406, %v407
    %v409 = vsub.f32 1.0, %v408
    %v410 = vmul.f32 %v407, %v409
    %v411 = vadd.f32 %v407, %v410
    %vm412 = vweird.f32 %v406
    %vm413 = vweird.f32 %v407
    %vm414 = vmor %vm412, %vm413
    %v415 = vsel %vm414, %v407, %v411
    %v416 = vand.u32 2147483647, %v406
    %vm417 = vcmp.eq.f32.partialorder %v416, 8.507059e+37
    %v418 = vand.u32 %v406, 2147483648
    %v419 = vor.u32 1.1754944e-38, %v418
    %v420 = vsel %vm417, %v419, %v415
    %v421 = vmul.f32 1.0, %v420
    %v422 = vtanh.pop %v402
    %v423 = vmul.f32 %v421, %v366
    %425 = vrot.lane.b32.xlu0 %v422, 64
    %v426 = vpop.permute.xlu0 %425
    %v428 = vmul.f32 %v421, %v426
    %430 = vrot.lane.b32.xlu0 %v428, 32
    %v431 = vpop.permute.xlu0 %430
    %v433 = vadd.f32 %v423, %v431
    %v434 = vtanh.pop %v433
    %436 = vrot.lane.b32.xlu0 %v434, 64
    %v437 = vpop.permute.xlu0 %436
    %v439 = vmul.f32 %v421, %v437
    %v440 = vrot.slane %v298, 2
    %v442 = vrot.slane %v300, 1
    %v444 = vsel %vm309, %v440, %v442
    %446 = vrot.lane.b32.xlu0 %v439, 32
    %v447 = vpop.permute.xlu0 %446
    %v448 = vsel %vm311, %v447, 0
    %450 = vmatpush.msra.mxu0 0.0
    %451 = vmatpush.msra.mxu0 0.0
    %452 = vmatpush.msra.mxu0 0.0
    %453 = vmatpush.msra.mxu0 0.0
    %454 = vmatpush.msra.mxu0 0.0
    %455 = vmatpush.msra.mxu0 0.0
    %456 = vmatpush.msra.mxu0 0.0
    %457 = vmatpush.msra.mxu0 0.0
    %458 = vmatpush.msra.mxu0 0.0
    %459 = vmatpush.msra.mxu0 0.0
    %460 = vmatpush.msra.mxu0 0.0
    %461 = vmatpush.msra.mxu0 0.0
    %462 = vmatpush.msra.mxu0 %v305
    %463 = vmatpush.msra.mxu0 %v304
    %464 = vmatpush.msra.mxu0 %v303
    %465 = vmatpush.msra.mxu0 %v302
    %466 = vmatmul.f32.gmra.mxu0 %v448
    %v467 = vpop.f32.mrf.mxu0
    %v468 = vadd.f32 0.0, %v467
    %469 = vdwg.mxu0
    %v470 = vadd.f32 %v444, %v468
    %v471 = vxor.u32 %v470, 2147483648
    %v472 = vmul.f32 %v471, 1.442695
    %v473 = vpow.pop %v472
    %v474 = vadd.f32 %v473, 1.0
    %v475 = vrcp.pop %v474
    %v476 = vmul.f32 %v474, %v475
    %v477 = vsub.f32 1.0, %v476
    %v478 = vmul.f32 %v475, %v477
    %v479 = vadd.f32 %v475, %v478
    %vm480 = vweird.f32 %v474
    %vm481 = vweird.f32 %v475
    %vm482 = vmor %vm480, %vm481
    %v483 = vsel %vm482, %v475, %v479
    %v484 = vand.u32 2147483647, %v474
    %vm485 = vcmp.eq.f32.partialorder %v484, 8.507059e+37
    %v486 = vand.u32 %v474, 2147483648
    %v487 = vor.u32 1.1754944e-38, %v486
    %v488 = vsel %vm485, %v487, %v483
    %v489 = vmul.f32 1.0, %v488
    %v490 = vtanh.pop %v470
    %v491 = vmul.f32 %v489, %v433
    %493 = vrot.lane.b32.xlu0 %v490, 64
    %v494 = vpop.permute.xlu0 %493
    %v496 = vmul.f32 %v489, %v494
    %498 = vrot.lane.b32.xlu0 %v496, 32
    %v499 = vpop.permute.xlu0 %498
    %v501 = vadd.f32 %v491, %v499
    %v502 = vtanh.pop %v501
    %504 = vrot.lane.b32.xlu0 %v502, 64
    %v505 = vpop.permute.xlu0 %504
    %v507 = vmul.f32 %v489, %v505
    %v508 = vrot.slane %v298, 3
    %v510 = vrot.slane %v300, 2
    %v512 = vsel %vm309, %v508, %v510
    %514 = vrot.lane.b32.xlu0 %v507, 32
    %v515 = vpop.permute.xlu0 %514
    %v516 = vsel %vm311, %v515, 0
    %518 = vmatpush.msra.mxu0 0.0
    %519 = vmatpush.msra.mxu0 0.0
    %520 = vmatpush.msra.mxu0 0.0
    %521 = vmatpush.msra.mxu0 0.0
    %522 = vmatpush.msra.mxu0 0.0
    %523 = vmatpush.msra.mxu0 0.0
    %524 = vmatpush.msra.mxu0 0.0
    %525 = vmatpush.msra.mxu0 0.0
    %526 = vmatpush.msra.mxu0 0.0
    %527 = vmatpush.msra.mxu0 0.0
    %528 = vmatpush.msra.mxu0 0.0
    %529 = vmatpush.msra.mxu0 0.0
    %530 = vmatpush.msra.mxu0 %v305
    %531 = vmatpush.msra.mxu0 %v304
    %532 = vmatpush.msra.mxu0 %v303
    %533 = vmatpush.msra.mxu0 %v302
    %534 = vmatmul.f32.gmra.mxu0 %v516
    %v535 = vpop.f32.mrf.mxu0
    %v536 = vadd.f32 0.0, %v535
    %537 = vdwg.mxu0
    %v538 = vadd.f32 %v512, %v536
    %v539 = vxor.u32 %v538, 2147483648
    %v540 = vmul.f32 %v539, 1.442695
    %v541 = vpow.pop %v540
    %v542 = vadd.f32 %v541, 1.0
    %v543 = vrcp.pop %v542
    %v544 = vmul.f32 %v542, %v543
    %v545 = vsub.f32 1.0, %v544
    %v546 = vmul.f32 %v543, %v545
    %v547 = vadd.f32 %v543, %v546
    %vm548 = vweird.f32 %v542
    %vm549 = vweird.f32 %v543
    %vm550 = vmor %vm548, %vm549
    %v551 = vsel %vm550, %v543, %v547
    %v552 = vand.u32 2147483647, %v542
    %vm553 = vcmp.eq.f32.partialorder %v552, 8.507059e+37
    %v554 = vand.u32 %v542, 2147483648
    %v555 = vor.u32 1.1754944e-38, %v554
    %v556 = vsel %vm553, %v555, %v551
    %v557 = vmul.f32 1.0, %v556
    %v558 = vtanh.pop %v538
    %v559 = vmul.f32 %v557, %v501
    %561 = vrot.lane.b32.xlu0 %v558, 64
    %v562 = vpop.permute.xlu0 %561
    %v564 = vmul.f32 %v557, %v562
    %566 = vrot.lane.b32.xlu0 %v564, 32
    %v567 = vpop.permute.xlu0 %566
    %v569 = vadd.f32 %v559, %v567
    %v570 = vtanh.pop %v569
    %572 = vrot.lane.b32.xlu0 %v570, 64
    %v573 = vpop.permute.xlu0 %572
    %v575 = vmul.f32 %v557, %v573
    %v576 = vrot.slane %v298, 4
    %v578 = vrot.slane %v300, 3
    %v580 = vsel %vm309, %v576, %v578
    %582 = vrot.lane.b32.xlu0 %v575, 32
    %v583 = vpop.permute.xlu0 %582
    %v584 = vsel %vm311, %v583, 0
    %586 = vmatpush.msra.mxu0 0.0
    %587 = vmatpush.msra.mxu0 0.0
    %588 = vmatpush.msra.mxu0 0.0
    %589 = vmatpush.msra.mxu0 0.0
    %590 = vmatpush.msra.mxu0 0.0
    %591 = vmatpush.msra.mxu0 0.0
    %592 = vmatpush.msra.mxu0 0.0
    %593 = vmatpush.msra.mxu0 0.0
    %594 = vmatpush.msra.mxu0 0.0
    %595 = vmatpush.msra.mxu0 0.0
    %596 = vmatpush.msra.mxu0 0.0
    %597 = vmatpush.msra.mxu0 0.0
    %598 = vmatpush.msra.mxu0 %v305
    %599 = vmatpush.msra.mxu0 %v304
    %600 = vmatpush.msra.mxu0 %v303
    %601 = vmatpush.msra.mxu0 %v302
    %602 = vmatmul.f32.gmra.mxu0 %v584
    %v603 = vpop.f32.mrf.mxu0
    %v604 = vadd.f32 0.0, %v603
    %605 = vdwg.mxu0
    %v606 = vadd.f32 %v580, %v604
    %v607 = vxor.u32 %v606, 2147483648
    %v608 = vmul.f32 %v607, 1.442695
    %v609 = vpow.pop %v608
    %v610 = vadd.f32 %v609, 1.0
    %v611 = vrcp.pop %v610
    %v612 = vmul.f32 %v610, %v611
    %v613 = vsub.f32 1.0, %v612
    %v614 = vmul.f32 %v611, %v613
    %v615 = vadd.f32 %v611, %v614
    %vm616 = vweird.f32 %v610
    %vm617 = vweird.f32 %v611
    %vm618 = vmor %vm616, %vm617
    %v619 = vsel %vm618, %v611, %v615
    %v620 = vand.u32 2147483647, %v610
    %vm621 = vcmp.eq.f32.partialorder %v620, 8.507059e+37
    %v622 = vand.u32 %v610, 2147483648
    %v623 = vor.u32 1.1754944e-38, %v622
    %v624 = vsel %vm621, %v623, %v619
    %v625 = vmul.f32 1.0, %v624
    %v626 = vtanh.pop %v606
    %v627 = vmul.f32 %v625, %v569
    %629 = vrot.lane.b32.xlu0 %v626, 64
    %v630 = vpop.permute.xlu0 %629
    %v632 = vmul.f32 %v625, %v630
    %634 = vrot.lane.b32.xlu0 %v632, 32
    %v635 = vpop.permute.xlu0 %634
    %v637 = vadd.f32 %v627, %v635
    %v638 = vtanh.pop %v637
    %640 = vrot.lane.b32.xlu0 %v638, 64
    %v641 = vpop.permute.xlu0 %640
    %v643 = vmul.f32 %v625, %v641
    %v644 = vrot.slane %v298, 5
    %v646 = vrot.slane %v300, 4
    %v648 = vsel %vm309, %v644, %v646
    %650 = vrot.lane.b32.xlu0 %v643, 32
    %v651 = vpop.permute.xlu0 %650
    %v652 = vsel %vm311, %v651, 0
    %654 = vmatpush.msra.mxu0 0.0
    %655 = vmatpush.msra.mxu0 0.0
    %656 = vmatpush.msra.mxu0 0.0
    %657 = vmatpush.msra.mxu0 0.0
    %658 = vmatpush.msra.mxu0 0.0
    %659 = vmatpush.msra.mxu0 0.0
    %660 = vmatpush.msra.mxu0 0.0
    %661 = vmatpush.msra.mxu0 0.0
    %662 = vmatpush.msra.mxu0 0.0
    %663 = vmatpush.msra.mxu0 0.0
    %664 = vmatpush.msra.mxu0 0.0
    %665 = vmatpush.msra.mxu0 0.0
    %666 = vmatpush.msra.mxu0 %v305
    %667 = vmatpush.msra.mxu0 %v304
    %668 = vmatpush.msra.mxu0 %v303
    %669 = vmatpush.msra.mxu0 %v302
    %670 = vmatmul.f32.gmra.mxu0 %v652
    %v671 = vpop.f32.mrf.mxu0
    %v672 = vadd.f32 0.0, %v671
    %673 = vdwg.mxu0
    %v674 = vadd.f32 %v648, %v672
    %v675 = vxor.u32 %v674, 2147483648
    %v676 = vmul.f32 %v675, 1.442695
    %v677 = vpow.pop %v676
    %v678 = vadd.f32 %v677, 1.0
    %v679 = vrcp.pop %v678
    %v680 = vmul.f32 %v678, %v679
    %v681 = vsub.f32 1.0, %v680
    %v682 = vmul.f32 %v679, %v681
    %v683 = vadd.f32 %v679, %v682
    %vm684 = vweird.f32 %v678
    %vm685 = vweird.f32 %v679
    %vm686 = vmor %vm684, %vm685
    %v687 = vsel %vm686, %v679, %v683
    %v688 = vand.u32 2147483647, %v678
    %vm689 = vcmp.eq.f32.partialorder %v688, 8.507059e+37
    %v690 = vand.u32 %v678, 2147483648
    %v691 = vor.u32 1.1754944e-38, %v690
    %v692 = vsel %vm689, %v691, %v687
    %v693 = vmul.f32 1.0, %v692
    %v694 = vtanh.pop %v674
    %v695 = vmul.f32 %v693, %v637
    %697 = vrot.lane.b32.xlu0 %v694, 64
    %v698 = vpop.permute.xlu0 %697
    %v700 = vmul.f32 %v693, %v698
    %702 = vrot.lane.b32.xlu0 %v700, 32
    %v703 = vpop.permute.xlu0 %702
    %v705 = vadd.f32 %v695, %v703
    %v706 = vtanh.pop %v705
    %708 = vrot.lane.b32.xlu0 %v706, 64
    %v709 = vpop.permute.xlu0 %708
    %v711 = vmul.f32 %v693, %v709
    %v712 = vrot.slane %v298, 6
    %v714 = vrot.slane %v300, 5
    %v716 = vsel %vm309, %v712, %v714
    %718 = vrot.lane.b32.xlu0 %v711, 32
    %v719 = vpop.permute.xlu0 %718
    %v720 = vsel %vm311, %v719, 0
    %722 = vmatpush.msra.mxu0 0.0
    %723 = vmatpush.msra.mxu0 0.0
    %724 = vmatpush.msra.mxu0 0.0
    %725 = vmatpush.msra.mxu0 0.0
    %726 = vmatpush.msra.mxu0 0.0
    %727 = vmatpush.msra.mxu0 0.0
    %728 = vmatpush.msra.mxu0 0.0
    %729 = vmatpush.msra.mxu0 0.0
    %730 = vmatpush.msra.mxu0 0.0
    %731 = vmatpush.msra.mxu0 0.0
    %732 = vmatpush.msra.mxu0 0.0
    %733 = vmatpush.msra.mxu0 0.0
    %734 = vmatpush.msra.mxu0 %v305
    %735 = vmatpush.msra.mxu0 %v304
    %736 = vmatpush.msra.mxu0 %v303
    %737 = vmatpush.msra.mxu0 %v302
    %738 = vmatmul.f32.gmra.mxu0 %v720
    %v739 = vpop.f32.mrf.mxu0
    %v740 = vadd.f32 0.0, %v739
    %741 = vdwg.mxu0
    %v742 = vadd.f32 %v716, %v740
    %v743 = vxor.u32 %v742, 2147483648
    %v744 = vmul.f32 %v743, 1.442695
    %v745 = vpow.pop %v744
    %v746 = vadd.f32 %v745, 1.0
    %v747 = vrcp.pop %v746
    %v748 = vmul.f32 %v746, %v747
    %v749 = vsub.f32 1.0, %v748
    %v750 = vmul.f32 %v747, %v749
    %v751 = vadd.f32 %v747, %v750
    %vm752 = vweird.f32 %v746
    %vm753 = vweird.f32 %v747
    %vm754 = vmor %vm752, %vm753
    %v755 = vsel %vm754, %v747, %v751
    %v756 = vand.u32 2147483647, %v746
    %vm757 = vcmp.eq.f32.partialorder %v756, 8.507059e+37
    %v758 = vand.u32 %v746, 2147483648
    %v759 = vor.u32 1.1754944e-38, %v758
    %v760 = vsel %vm757, %v759, %v755
    %v761 = vmul.f32 1.0, %v760
    %v762 = vtanh.pop %v742
    %v763 = vmul.f32 %v761, %v705
    %765 = vrot.lane.b32.xlu0 %v762, 64
    %v766 = vpop.permute.xlu0 %765
    %v768 = vmul.f32 %v761, %v766
    %770 = vrot.lane.b32.xlu0 %v768, 32
    %v771 = vpop.permute.xlu0 %770
    %v773 = vadd.f32 %v763, %v771
    %v774 = vtanh.pop %v773
    %776 = vrot.lane.b32.xlu0 %v774, 64
    %v777 = vpop.permute.xlu0 %776
    %v779 = vmul.f32 %v761, %v777
    %v780 = vrot.slane %v298, 7
    %v782 = vrot.slane %v300, 6
    %v784 = vsel %vm309, %v780, %v782
    %786 = vrot.lane.b32.xlu0 %v779, 32
    %v787 = vpop.permute.xlu0 %786
    %v788 = vsel %vm311, %v787, 0
    %790 = vmatpush.msra.mxu0 0.0
    %791 = vmatpush.msra.mxu0 0.0
    %792 = vmatpush.msra.mxu0 0.0
    %793 = vmatpush.msra.mxu0 0.0
    %794 = vmatpush.msra.mxu0 0.0
    %795 = vmatpush.msra.mxu0 0.0
    %796 = vmatpush.msra.mxu0 0.0
    %797 = vmatpush.msra.mxu0 0.0
    %798 = vmatpush.msra.mxu0 0.0
    %799 = vmatpush.msra.mxu0 0.0
    %800 = vmatpush.msra.mxu0 0.0
    %801 = vmatpush.msra.mxu0 0.0
    %802 = vmatpush.msra.mxu0 %v305
    %803 = vmatpush.msra.mxu0 %v304
    %804 = vmatpush.msra.mxu0 %v303
    %805 = vmatpush.msra.mxu0 %v302
    %806 = vmatmul.f32.gmra.mxu0 %v788
    %v807 = vpop.f32.mrf.mxu0
    %v808 = vadd.f32 0.0, %v807
    %809 = vdwg.mxu0
    %v810 = vadd.f32 %v784, %v808
    %v811 = vxor.u32 %v810, 2147483648
    %v812 = vmul.f32 %v811, 1.442695
    %v813 = vpow.pop %v812
    %v814 = vadd.f32 %v813, 1.0
    %v815 = vrcp.pop %v814
    %v816 = vmul.f32 %v814, %v815
    %v817 = vsub.f32 1.0, %v816
    %v818 = vmul.f32 %v815, %v817
    %v819 = vadd.f32 %v815, %v818
    %vm820 = vweird.f32 %v814
    %vm821 = vweird.f32 %v815
    %vm822 = vmor %vm820, %vm821
    %v823 = vsel %vm822, %v815, %v819
    %v824 = vand.u32 2147483647, %v814
    %vm825 = vcmp.eq.f32.partialorder %v824, 8.507059e+37
    %v826 = vand.u32 %v814, 2147483648
    %v827 = vor.u32 1.1754944e-38, %v826
    %v828 = vsel %vm825, %v827, %v823
    %v829 = vmul.f32 1.0, %v828
    %v830 = vtanh.pop %v810
    %v831 = vmul.f32 %v829, %v773
    %833 = vrot.lane.b32.xlu0 %v830, 64
    %v834 = vpop.permute.xlu0 %833
    %v836 = vmul.f32 %v829, %v834
    %838 = vrot.lane.b32.xlu0 %v836, 32
    %v839 = vpop.permute.xlu0 %838
    %v841 = vadd.f32 %v831, %v839
    %v842 = vtanh.pop %v841
    %844 = vrot.lane.b32.xlu0 %v842, 64
    %v845 = vpop.permute.xlu0 %844
    %v847 = vmul.f32 %v829, %v845
    %v849 = vrot.slane %v301, 7
    %v851 = vsel %vm309, %v299, %v849
    %853 = vrot.lane.b32.xlu0 %v847, 32
    %v854 = vpop.permute.xlu0 %853
    %v855 = vsel %vm311, %v854, 0
    %857 = vmatpush.msra.mxu0 0.0
    %858 = vmatpush.msra.mxu0 0.0
    %859 = vmatpush.msra.mxu0 0.0
    %860 = vmatpush.msra.mxu0 0.0
    %861 = vmatpush.msra.mxu0 0.0
    %862 = vmatpush.msra.mxu0 0.0
    %863 = vmatpush.msra.mxu0 0.0
    %864 = vmatpush.msra.mxu0 0.0
    %865 = vmatpush.msra.mxu0 0.0
    %866 = vmatpush.msra.mxu0 0.0
    %867 = vmatpush.msra.mxu0 0.0
    %868 = vmatpush.msra.mxu0 0.0
    %869 = vmatpush.msra.mxu0 %v305
    %870 = vmatpush.msra.mxu0 %v304
    %871 = vmatpush.msra.mxu0 %v303
    %872 = vmatpush.msra.mxu0 %v302
    %873 = vmatmul.f32.gmra.mxu0 %v855
    %v874 = vpop.f32.mrf.mxu0
    %v875 = vadd.f32 0.0, %v874
    %876 = vdwg.mxu0
    %v877 = vadd.f32 %v851, %v875
    %v878 = vxor.u32 %v877, 2147483648
    %v879 = vmul.f32 %v878, 1.442695
    %v880 = vpow.pop %v879
    %v881 = vadd.f32 %v880, 1.0
    %v882 = vrcp.pop %v881
    %v883 = vmul.f32 %v881, %v882
    %v884 = vsub.f32 1.0, %v883
    %v885 = vmul.f32 %v882, %v884
    %v886 = vadd.f32 %v882, %v885
    %vm887 = vweird.f32 %v881
    %vm888 = vweird.f32 %v882
    %vm889 = vmor %vm887, %vm888
    %v890 = vsel %vm889, %v882, %v886
    %v891 = vand.u32 2147483647, %v881
    %vm892 = vcmp.eq.f32.partialorder %v891, 8.507059e+37
    %v893 = vand.u32 %v881, 2147483648
    %v894 = vor.u32 1.1754944e-38, %v893
    %v895 = vsel %vm892, %v894, %v890
    %v896 = vmul.f32 1.0, %v895
    %v897 = vtanh.pop %v877
    %v898 = vmul.f32 %v896, %v841
    %900 = vrot.lane.b32.xlu0 %v897, 64
    %v901 = vpop.permute.xlu0 %900
    %v903 = vmul.f32 %v896, %v901
    %905 = vrot.lane.b32.xlu0 %v903, 32
    %v906 = vpop.permute.xlu0 %905
    %v908 = vadd.f32 %v898, %v906
    %v909 = vtanh.pop %v908
    %911 = vrot.lane.b32.xlu0 %v909, 64
    %v912 = vpop.permute.xlu0 %911
    %v914 = vmul.f32 %v896, %v912
    %v916 = vrot.slane %v299, 1
    %v918 = vsel %vm309, %v916, %v301
    %920 = vrot.lane.b32.xlu0 %v914, 32
    %v921 = vpop.permute.xlu0 %920
    %v922 = vsel %vm311, %v921, 0
    %924 = vmatpush.msra.mxu0 0.0
    %925 = vmatpush.msra.mxu0 0.0
    %926 = vmatpush.msra.mxu0 0.0
    %927 = vmatpush.msra.mxu0 0.0
    %928 = vmatpush.msra.mxu0 0.0
    %929 = vmatpush.msra.mxu0 0.0
    %930 = vmatpush.msra.mxu0 0.0
    %931 = vmatpush.msra.mxu0 0.0
    %932 = vmatpush.msra.mxu0 0.0
    %933 = vmatpush.msra.mxu0 0.0
    %934 = vmatpush.msra.mxu0 0.0
    %935 = vmatpush.msra.mxu0 0.0
    %936 = vmatpush.msra.mxu0 %v305
    %937 = vmatpush.msra.mxu0 %v304
    %938 = vmatpush.msra.mxu0 %v303
    %939 = vmatpush.msra.mxu0 %v302
    %940 = vmatmul.f32.gmra.mxu0 %v922
    %v941 = vpop.f32.mrf.mxu0
    %v942 = vadd.f32 0.0, %v941
    %943 = vdwg.mxu0
    %v944 = vadd.f32 %v918, %v942
    %v945 = vxor.u32 %v944, 2147483648
    %v946 = vmul.f32 %v945, 1.442695
    %v947 = vpow.pop %v946
    %v948 = vadd.f32 %v947, 1.0
    %v949 = vrcp.pop %v948
    %v950 = vmul.f32 %v948, %v949
    %v951 = vsub.f32 1.0, %v950
    %v952 = vmul.f32 %v949, %v951
    %v953 = vadd.f32 %v949, %v952
    %vm954 = vweird.f32 %v948
    %vm955 = vweird.f32 %v949
    %vm956 = vmor %vm954, %vm955
    %v957 = vsel %vm956, %v949, %v953
    %v958 = vand.u32 2147483647, %v948
    %vm959 = vcmp.eq.f32.partialorder %v958, 8.507059e+37
    %v960 = vand.u32 %v948, 2147483648
    %v961 = vor.u32 1.1754944e-38, %v960
    %v962 = vsel %vm959, %v961, %v957
    %v963 = vmul.f32 1.0, %v962
    %v964 = vtanh.pop %v944
    %v965 = vmul.f32 %v963, %v908
    %967 = vrot.lane.b32.xlu0 %v964, 64
    %v968 = vpop.permute.xlu0 %967
    %v970 = vmul.f32 %v963, %v968
    %972 = vrot.lane.b32.xlu0 %v970, 32
    %v973 = vpop.permute.xlu0 %972
    %v975 = vadd.f32 %v965, %v973
    %v976 = vtanh.pop %v975
    %978 = vrot.lane.b32.xlu0 %v976, 64
    %v979 = vpop.permute.xlu0 %978
    %v981 = vmul.f32 %v963, %v979
    %v982 = vrot.slane %v299, 2
    %v984 = vrot.slane %v301, 1
    %v986 = vsel %vm309, %v982, %v984
    %988 = vrot.lane.b32.xlu0 %v981, 32
    %v989 = vpop.permute.xlu0 %988
    %v990 = vsel %vm311, %v989, 0
    %992 = vmatpush.msra.mxu0 0.0
    %993 = vmatpush.msra.mxu0 0.0
    %994 = vmatpush.msra.mxu0 0.0
    %995 = vmatpush.msra.mxu0 0.0
    %996 = vmatpush.msra.mxu0 0.0
    %997 = vmatpush.msra.mxu0 0.0
    %998 = vmatpush.msra.mxu0 0.0
    %999 = vmatpush.msra.mxu0 0.0
    %1000 = vmatpush.msra.mxu0 0.0
    %1001 = vmatpush.msra.mxu0 0.0
    %1002 = vmatpush.msra.mxu0 0.0
    %1003 = vmatpush.msra.mxu0 0.0
    %1004 = vmatpush.msra.mxu0 %v305
    %1005 = vmatpush.msra.mxu0 %v304
    %1006 = vmatpush.msra.mxu0 %v303
    %1007 = vmatpush.msra.mxu0 %v302
    %1008 = vmatmul.f32.gmra.mxu0 %v990
    %v1009 = vpop.f32.mrf.mxu0
    %v1010 = vadd.f32 0.0, %v1009
    %1011 = vdwg.mxu0
    %v1012 = vadd.f32 %v986, %v1010
    %v1013 = vxor.u32 %v1012, 2147483648
    %v1014 = vmul.f32 %v1013, 1.442695
    %v1015 = vpow.pop %v1014
    %v1016 = vadd.f32 %v1015, 1.0
    %v1017 = vrcp.pop %v1016
    %v1018 = vmul.f32 %v1016, %v1017
    %v1019 = vsub.f32 1.0, %v1018
    %v1020 = vmul.f32 %v1017, %v1019
    %v1021 = vadd.f32 %v1017, %v1020
    %vm1022 = vweird.f32 %v1016
    %vm1023 = vweird.f32 %v1017
    %vm1024 = vmor %vm1022, %vm1023
    %v1025 = vsel %vm1024, %v1017, %v1021
    %v1026 = vand.u32 2147483647, %v1016
    %vm1027 = vcmp.eq.f32.partialorder %v1026, 8.507059e+37
    %v1028 = vand.u32 %v1016, 2147483648
    %v1029 = vor.u32 1.1754944e-38, %v1028
    %v1030 = vsel %vm1027, %v1029, %v1025
    %v1031 = vmul.f32 1.0, %v1030
    %v1032 = vtanh.pop %v1012
    %v1033 = vmul.f32 %v1031, %v975
    %1035 = vrot.lane.b32.xlu0 %v1032, 64
    %v1036 = vpop.permute.xlu0 %1035
    %v1038 = vmul.f32 %v1031, %v1036
    %1040 = vrot.lane.b32.xlu0 %v1038, 32
    %v1041 = vpop.permute.xlu0 %1040
    %v1043 = vadd.f32 %v1033, %v1041
    %v1044 = vtanh.pop %v1043
    %1046 = vrot.lane.b32.xlu0 %v1044, 64
    %v1047 = vpop.permute.xlu0 %1046
    %v1049 = vmul.f32 %v1031, %v1047
    %v1050 = vrot.slane %v299, 3
    %v1052 = vrot.slane %v301, 2
    %v1054 = vsel %vm309, %v1050, %v1052
    %1056 = vrot.lane.b32.xlu0 %v1049, 32
    %v1057 = vpop.permute.xlu0 %1056
    %v1058 = vsel %vm311, %v1057, 0
    %1060 = vmatpush.msra.mxu0 0.0
    %1061 = vmatpush.msra.mxu0 0.0
    %1062 = vmatpush.msra.mxu0 0.0
    %1063 = vmatpush.msra.mxu0 0.0
    %1064 = vmatpush.msra.mxu0 0.0
    %1065 = vmatpush.msra.mxu0 0.0
    %1066 = vmatpush.msra.mxu0 0.0
    %1067 = vmatpush.msra.mxu0 0.0
    %1068 = vmatpush.msra.mxu0 0.0
    %1069 = vmatpush.msra.mxu0 0.0
    %1070 = vmatpush.msra.mxu0 0.0
    %1071 = vmatpush.msra.mxu0 0.0
    %1072 = vmatpush.msra.mxu0 %v305
    %1073 = vmatpush.msra.mxu0 %v304
    %1074 = vmatpush.msra.mxu0 %v303
    %1075 = vmatpush.msra.mxu0 %v302
    %1076 = vmatmul.f32.gmra.mxu0 %v1058
    %v1077 = vpop.f32.mrf.mxu0
    %v1078 = vadd.f32 0.0, %v1077
    %1079 = vdwg.mxu0
    %v1080 = vadd.f32 %v1054, %v1078
    %v1081 = vxor.u32 %v1080, 2147483648
    %v1082 = vmul.f32 %v1081, 1.442695
    %v1083 = vpow.pop %v1082
    %v1084 = vadd.f32 %v1083, 1.0
    %v1085 = vrcp.pop %v1084
    %v1086 = vmul.f32 %v1084, %v1085
    %v1087 = vsub.f32 1.0, %v1086
    %v1088 = vmul.f32 %v1085, %v1087
    %v1089 = vadd.f32 %v1085, %v1088
    %vm1090 = vweird.f32 %v1084
    %vm1091 = vweird.f32 %v1085
    %vm1092 = vmor %vm1090, %vm1091
    %v1093 = vsel %vm1092, %v1085, %v1089
    %v1094 = vand.u32 2147483647, %v1084
    %vm1095 = vcmp.eq.f32.partialorder %v1094, 8.507059e+37
    %v1096 = vand.u32 %v1084, 2147483648
    %v1097 = vor.u32 1.1754944e-38, %v1096
    %v1098 = vsel %vm1095, %v1097, %v1093
    %v1099 = vmul.f32 1.0, %v1098
    %v1100 = vtanh.pop %v1080
    %v1101 = vmul.f32 %v1099, %v1043
    %1103 = vrot.lane.b32.xlu0 %v1100, 64
    %v1104 = vpop.permute.xlu0 %1103
    %v1106 = vmul.f32 %v1099, %v1104
    %1108 = vrot.lane.b32.xlu0 %v1106, 32
    %v1109 = vpop.permute.xlu0 %1108
    %v1111 = vadd.f32 %v1101, %v1109
    %v1112 = vtanh.pop %v1111
    %1114 = vrot.lane.b32.xlu0 %v1112, 64
    %v1115 = vpop.permute.xlu0 %1114
    %v1117 = vmul.f32 %v1099, %v1115
    %v1118 = vrot.slane %v299, 4
    %v1120 = vrot.slane %v301, 3
    %v1122 = vsel %vm309, %v1118, %v1120
    %1124 = vrot.lane.b32.xlu0 %v1117, 32
    %v1125 = vpop.permute.xlu0 %1124
    %v1126 = vsel %vm311, %v1125, 0
    %1128 = vmatpush.msra.mxu0 0.0
    %1129 = vmatpush.msra.mxu0 0.0
    %1130 = vmatpush.msra.mxu0 0.0
    %1131 = vmatpush.msra.mxu0 0.0
    %1132 = vmatpush.msra.mxu0 0.0
    %1133 = vmatpush.msra.mxu0 0.0
    %1134 = vmatpush.msra.mxu0 0.0
    %1135 = vmatpush.msra.mxu0 0.0
    %1136 = vmatpush.msra.mxu0 0.0
    %1137 = vmatpush.msra.mxu0 0.0
    %1138 = vmatpush.msra.mxu0 0.0
    %1139 = vmatpush.msra.mxu0 0.0
    %1140 = vmatpush.msra.mxu0 %v305
    %1141 = vmatpush.msra.mxu0 %v304
    %1142 = vmatpush.msra.mxu0 %v303
    %1143 = vmatpush.msra.mxu0 %v302
    %1144 = vmatmul.f32.gmra.mxu0 %v1126
    %v1145 = vpop.f32.mrf.mxu0
    %v1146 = vadd.f32 0.0, %v1145
    %1147 = vdwg.mxu0
    %v1148 = vadd.f32 %v1122, %v1146
    %v1149 = vxor.u32 %v1148, 2147483648
    %v1150 = vmul.f32 %v1149, 1.442695
    %v1151 = vpow.pop %v1150
    %v1152 = vadd.f32 %v1151, 1.0
    %v1153 = vrcp.pop %v1152
    %v1154 = vmul.f32 %v1152, %v1153
    %v1155 = vsub.f32 1.0, %v1154
    %v1156 = vmul.f32 %v1153, %v1155
    %v1157 = vadd.f32 %v1153, %v1156
    %vm1158 = vweird.f32 %v1152
    %vm1159 = vweird.f32 %v1153
    %vm1160 = vmor %vm1158, %vm1159
    %v1161 = vsel %vm1160, %v1153, %v1157
    %v1162 = vand.u32 2147483647, %v1152
    %vm1163 = vcmp.eq.f32.partialorder %v1162, 8.507059e+37
    %v1164 = vand.u32 %v1152, 2147483648
    %v1165 = vor.u32 1.1754944e-38, %v1164
    %v1166 = vsel %vm1163, %v1165, %v1161
    %v1167 = vmul.f32 1.0, %v1166
    %v1168 = vtanh.pop %v1148
    %v1169 = vmul.f32 %v1167, %v1111
    %1171 = vrot.lane.b32.xlu0 %v1168, 64
    %v1172 = vpop.permute.xlu0 %1171
    %v1174 = vmul.f32 %v1167, %v1172
    %1176 = vrot.lane.b32.xlu0 %v1174, 32
    %v1177 = vpop.permute.xlu0 %1176
    %v1179 = vadd.f32 %v1169, %v1177
    %v1180 = vtanh.pop %v1179
    %1182 = vrot.lane.b32.xlu0 %v1180, 64
    %v1183 = vpop.permute.xlu0 %1182
    %v1185 = vmul.f32 %v1167, %v1183
    %v1186 = vrot.slane %v299, 5
    %v1188 = vrot.slane %v301, 4
    %v1190 = vsel %vm309, %v1186, %v1188
    %1192 = vrot.lane.b32.xlu0 %v1185, 32
    %v1193 = vpop.permute.xlu0 %1192
    %v1194 = vsel %vm311, %v1193, 0
    %1196 = vmatpush.msra.mxu0 0.0
    %1197 = vmatpush.msra.mxu0 0.0
    %1198 = vmatpush.msra.mxu0 0.0
    %1199 = vmatpush.msra.mxu0 0.0
    %1200 = vmatpush.msra.mxu0 0.0
    %1201 = vmatpush.msra.mxu0 0.0
    %1202 = vmatpush.msra.mxu0 0.0
    %1203 = vmatpush.msra.mxu0 0.0
    %1204 = vmatpush.msra.mxu0 0.0
    %1205 = vmatpush.msra.mxu0 0.0
    %1206 = vmatpush.msra.mxu0 0.0
    %1207 = vmatpush.msra.mxu0 0.0
    %1208 = vmatpush.msra.mxu0 %v305
    %1209 = vmatpush.msra.mxu0 %v304
    %1210 = vmatpush.msra.mxu0 %v303
    %1211 = vmatpush.msra.mxu0 %v302
    %1212 = vmatmul.f32.gmra.mxu0 %v1194
    %v1213 = vpop.f32.mrf.mxu0
    %v1214 = vadd.f32 0.0, %v1213
    %1215 = vdwg.mxu0
    %v1216 = vadd.f32 %v1190, %v1214
    %v1217 = vxor.u32 %v1216, 2147483648
    %v1218 = vmul.f32 %v1217, 1.442695
    %v1219 = vpow.pop %v1218
    %v1220 = vadd.f32 %v1219, 1.0
    %v1221 = vrcp.pop %v1220
    %v1222 = vmul.f32 %v1220, %v1221
    %v1223 = vsub.f32 1.0, %v1222
    %v1224 = vmul.f32 %v1221, %v1223
    %v1225 = vadd.f32 %v1221, %v1224
    %vm1226 = vweird.f32 %v1220
    %vm1227 = vweird.f32 %v1221
    %vm1228 = vmor %vm1226, %vm1227
    %v1229 = vsel %vm1228, %v1221, %v1225
    %v1230 = vand.u32 2147483647, %v1220
    %vm1231 = vcmp.eq.f32.partialorder %v1230, 8.507059e+37
    %v1232 = vand.u32 %v1220, 2147483648
    %v1233 = vor.u32 1.1754944e-38, %v1232
    %v1234 = vsel %vm1231, %v1233, %v1229
    %v1235 = vmul.f32 1.0, %v1234
    %v1236 = vtanh.pop %v1216
    %v1237 = vmul.f32 %v1235, %v1179
    %1239 = vrot.lane.b32.xlu0 %v1236, 64
    %v1240 = vpop.permute.xlu0 %1239
    %v1242 = vmul.f32 %v1235, %v1240
    %1244 = vrot.lane.b32.xlu0 %v1242, 32
    %v1245 = vpop.permute.xlu0 %1244
    %v1247 = vadd.f32 %v1237, %v1245
    %v1248 = vtanh.pop %v1247
    %1250 = vrot.lane.b32.xlu0 %v1248, 64
    %v1251 = vpop.permute.xlu0 %1250
    %v1253 = vmul.f32 %v1235, %v1251
    %v1254 = vrot.slane %v299, 6
    %v1256 = vrot.slane %v301, 5
    %v1258 = vsel %vm309, %v1254, %v1256
    %1260 = vrot.lane.b32.xlu0 %v1253, 32
    %v1261 = vpop.permute.xlu0 %1260
    %v1262 = vsel %vm311, %v1261, 0
    %1264 = vmatpush.msra.mxu0 0.0
    %1265 = vmatpush.msra.mxu0 0.0
    %1266 = vmatpush.msra.mxu0 0.0
    %1267 = vmatpush.msra.mxu0 0.0
    %1268 = vmatpush.msra.mxu0 0.0
    %1269 = vmatpush.msra.mxu0 0.0
    %1270 = vmatpush.msra.mxu0 0.0
    %1271 = vmatpush.msra.mxu0 0.0
    %1272 = vmatpush.msra.mxu0 0.0
    %1273 = vmatpush.msra.mxu0 0.0
    %1274 = vmatpush.msra.mxu0 0.0
    %1275 = vmatpush.msra.mxu0 0.0
    %1276 = vmatpush.msra.mxu0 %v305
    %1277 = vmatpush.msra.mxu0 %v304
    %1278 = vmatpush.msra.mxu0 %v303
    %1279 = vmatpush.msra.mxu0 %v302
    %1280 = vmatmul.f32.gmra.mxu0 %v1262
    %v1281 = vpop.f32.mrf.mxu0
    %v1282 = vadd.f32 0.0, %v1281
    %1283 = vdwg.mxu0
    %v1284 = vadd.f32 %v1258, %v1282
    %v1285 = vxor.u32 %v1284, 2147483648
    %v1286 = vmul.f32 %v1285, 1.442695
    %v1287 = vpow.pop %v1286
    %v1288 = vadd.f32 %v1287, 1.0
    %v1289 = vrcp.pop %v1288
    %v1290 = vmul.f32 %v1288, %v1289
    %v1291 = vsub.f32 1.0, %v1290
    %v1292 = vmul.f32 %v1289, %v1291
    %v1293 = vadd.f32 %v1289, %v1292
    %vm1294 = vweird.f32 %v1288
    %vm1295 = vweird.f32 %v1289
    %vm1296 = vmor %vm1294, %vm1295
    %v1297 = vsel %vm1296, %v1289, %v1293
    %v1298 = vand.u32 2147483647, %v1288
    %vm1299 = vcmp.eq.f32.partialorder %v1298, 8.507059e+37
    %v1300 = vand.u32 %v1288, 2147483648
    %v1301 = vor.u32 1.1754944e-38, %v1300
    %v1302 = vsel %vm1299, %v1301, %v1297
    %v1303 = vmul.f32 1.0, %v1302
    %v1304 = vtanh.pop %v1284
    %v1305 = vmul.f32 %v1303, %v1247
    %1307 = vrot.lane.b32.xlu0 %v1304, 64
    %v1308 = vpop.permute.xlu0 %1307
    %v1310 = vmul.f32 %v1303, %v1308
    %1312 = vrot.lane.b32.xlu0 %v1310, 32
    %v1313 = vpop.permute.xlu0 %1312
    %v1315 = vadd.f32 %v1305, %v1313
    %v1316 = vtanh.pop %v1315
    %1318 = vrot.lane.b32.xlu0 %v1316, 64
    %v1319 = vpop.permute.xlu0 %1318
    %v1321 = vmul.f32 %v1303, %v1319
    %v1322 = vrot.slane %v299, 7
    %v1324 = vrot.slane %v301, 6
    %v1326 = vsel %vm309, %v1322, %v1324
    %1328 = vrot.lane.b32.xlu0 %v1321, 32
    %v1329 = vpop.permute.xlu0 %1328
    %v1330 = vsel %vm311, %v1329, 0
    %1332 = vmatpush.msra.mxu0 0.0
    %1333 = vmatpush.msra.mxu0 0.0
    %1334 = vmatpush.msra.mxu0 0.0
    %1335 = vmatpush.msra.mxu0 0.0
    %1336 = vmatpush.msra.mxu0 0.0
    %1337 = vmatpush.msra.mxu0 0.0
    %1338 = vmatpush.msra.mxu0 0.0
    %1339 = vmatpush.msra.mxu0 0.0
    %1340 = vmatpush.msra.mxu0 0.0
    %1341 = vmatpush.msra.mxu0 0.0
    %1342 = vmatpush.msra.mxu0 0.0
    %1343 = vmatpush.msra.mxu0 0.0
    %1344 = vmatpush.msra.mxu0 %v305
    %1345 = vmatpush.msra.mxu0 %v304
    %1346 = vmatpush.msra.mxu0 %v303
    %1347 = vmatpush.msra.mxu0 %v302
    %1348 = vmatmul.f32.gmra.mxu0 %v1330
    %v1349 = vpop.f32.mrf.mxu0
    %v1350 = vadd.f32 0.0, %v1349
    %1351 = vdwg.mxu0
    %v1352 = vadd.f32 %v1326, %v1350
    %v1353 = vxor.u32 %v1352, 2147483648
    %v1354 = vmul.f32 %v1353, 1.442695
    %v1355 = vpow.pop %v1354
    %v1356 = vadd.f32 %v1355, 1.0
    %v1357 = vrcp.pop %v1356
    %v1358 = vmul.f32 %v1356, %v1357
    %v1359 = vsub.f32 1.0, %v1358
    %v1360 = vmul.f32 %v1357, %v1359
    %v1361 = vadd.f32 %v1357, %v1360
    %vm1362 = vweird.f32 %v1356
    %vm1363 = vweird.f32 %v1357
    %vm1364 = vmor %vm1362, %vm1363
    %v1365 = vsel %vm1364, %v1357, %v1361
    %v1366 = vand.u32 2147483647, %v1356
    %vm1367 = vcmp.eq.f32.partialorder %v1366, 8.507059e+37
    %v1368 = vand.u32 %v1356, 2147483648
    %v1369 = vor.u32 1.1754944e-38, %v1368
    %v1370 = vsel %vm1367, %v1369, %v1365
    %v1371 = vmul.f32 1.0, %v1370
    %v1372 = vtanh.pop %v1352
    %v1373 = vmul.f32 %v1371, %v1315
    %1375 = vrot.lane.b32.xlu0 %v1372, 64
    %v1376 = vpop.permute.xlu0 %1375
    %v1378 = vmul.f32 %v1371, %v1376
    %1380 = vrot.lane.b32.xlu0 %v1378, 32
    %v1381 = vpop.permute.xlu0 %1380
    %v1383 = vadd.f32 %v1373, %v1381
    %v1384 = vtanh.pop %v1383
    %1386 = vrot.lane.b32.xlu0 %v1384, 64
    %v1387 = vpop.permute.xlu0 %1386
    %v1389 = vmul.f32 %v1371, %v1387
    %v1390 = vld [vmem:[%s4] sm:$0xff]
    %v1391 = vld [vmem:[%s4 + $0x8] sm:$0xff]
    %v1392 = vld [vmem:[%s4 + $0x10] sm:$0xff]
    %v1393 = vld [vmem:[%s4 + $0x18] sm:$0xff]
    %v1394 = vld [vmem:[%s5] sm:$0x1]
    %v1396 = vperm.slane %v1394, 0
    %1399 = vrot.lane.b32.xlu0 %v1389, 32
    %v1400 = vpop.permute.xlu0 %1399
    %v1401 = vsel %vm311, %v1400, 0
    %1403 = vmatpush.msra.mxu0 0.0
    %1404 = vmatpush.msra.mxu0 0.0
    %1405 = vmatpush.msra.mxu0 0.0
    %1406 = vmatpush.msra.mxu0 0.0
    %1407 = vmatpush.msra.mxu0 0.0
    %1408 = vmatpush.msra.mxu0 0.0
    %1409 = vmatpush.msra.mxu0 0.0
    %1410 = vmatpush.msra.mxu0 0.0
    %1411 = vmatpush.msra.mxu0 0.0
    %1412 = vmatpush.msra.mxu0 0.0
    %1413 = vmatpush.msra.mxu0 0.0
    %1414 = vmatpush.msra.mxu0 0.0
    %1415 = vmatpush.msra.mxu0 %v1393
    %1416 = vmatpush.msra.mxu0 %v1392
    %1417 = vmatpush.msra.mxu0 %v1391
    %1418 = vmatpush.msra.mxu0 %v1390
    %1419 = vmatmul.f32.gmra.mxu0 %v1401
    %v1420 = vpop.f32.mrf.mxu0
    %v1421 = vadd.f32 %v1396, %v1420
    %1422 = vdwg.mxu0
    %vm1423 = vcmask 58368
    %1424 = vst.msk [vmem:[#allocation2] sm:$0x3] %vm1423, %v1421
    // Predicated region
    $region26: #{single_lstm_forward.1} parent=1 // pred_check
      _
    $region27: #{single_lstm_forward.1} parent=1 // pred_check_branch
      %1426 = sbr.rel (0) target = $region29
    $region28: #{single_lstm_forward.1} parent=1 // pred_region
      %1428 = vsyncadd [#allocation3], 0
      %s1430 = sshll.u32 [#allocation2], 4
      %s1431 = int_to_ptr.vmem [resolvable:$true] %s1430
      %s1432 = sshll.u32 %s6, 4
      %s1433 = int_to_ptr.hbm [resolvable:$true] %s1432
      %1435 = dma.vmem_to_hbm [thread:$0]  %s1431, 32, %s1433, [#allocation3]
    $region29: #{single_lstm_forward.1} parent=1 // pred_fallthru
      _
    // Predicated region
    $region30: #{single_lstm_forward.1} parent=1 // pred_check
      _
    $region31: #{single_lstm_forward.1} parent=1 // pred_check_branch
      %1437 = sbr.rel (0) target = $region33
    $region32: #{single_lstm_forward.1} parent=1 // pred_region
      %1439 = dma.done [#allocation3], 32
    $region33: #{single_lstm_forward.1} parent=1 // pred_fallthru
      _
    %1440 = vsyncpa [#allocation3], 1

</llo_original>
